<compile_context>
chip_gen: v6e
topology: v6e:2x2x1
jax: 0.10.0
libtpu: 0.0.40
codegen_flags: <defaults>
</compile_context>

<pallas_src>
import functools

import jax
import jax.numpy as jnp
from jax.experimental import pallas as pl
from jax.experimental.pallas import tpu as pltpu

CP = 128  # lane-padded channel width for conv outputs


# ----------------------------------------------------------------------------
# Pallas kernel: fused conv-matmul + (bias/BN folded) shift + ReLU + pool
# ----------------------------------------------------------------------------
def _conv_bn_relu_pool_kernel(p_ref, w_ref, shift_ref, o_ref, *, group, pool):
    """p_ref: (TR, K) bf16 im2col patches (rows grouped per pool window)
    w_ref:     (K, CP)  bf16 conv weight with BN scale folded in (lane-padded)
    shift_ref: (1, CP)  f32  b*scale + beta - mean*scale (lane-padded)
    o_ref:     (TR//group, CP) f32
    group/pool: static; pool in {"max", "mean"}.
    """
    acc = jnp.dot(p_ref[...], w_ref[...], preferred_element_type=jnp.float32)
    y = jnp.maximum(acc + shift_ref[...], 0.0)
    if group > 1:
        tr, cp = y.shape
        y = y.reshape(tr // group, group, cp)
        if pool == "max":
            y = jnp.max(y, axis=1)       # fused MaxPool3d(2)
        else:
            y = jnp.mean(y, axis=1)      # fused AdaptiveAvgPool3d(1)
    o_ref[...] = y


# ----------------------------------------------------------------------------
# Wrappers (layout plumbing: channels-last im2col, parameter folding)
# ----------------------------------------------------------------------------
# TODO(synk): im2col still runs in XLA; in-kernel halo-DMA patch assembly
# (memory_space=pl.ANY + make_async_copy) from the review is not implemented.
def _im2col_grouped(x, k, stride, pad, pool):
    """x: (N, D, H, W, C) channels-last.

    Returns (rows, C*k^3) patches whose K axis is (cin, kd, kh, kw) ordered to
    match torch's weight.reshape(Cout, Cin*k^3).  For pool == "max" the rows
    are re-ordered so each 2x2x2 pool window occupies 8 consecutive rows; for
    pool == "mean" natural (n, od, oh, ow) order gives one group per sample.
    """
    n, d, h, w, c = x.shape
    xp = jnp.pad(x, ((0, 0), (pad, pad), (pad, pad), (pad, pad), (0, 0)))
    od = (d + 2 * pad - k) // stride + 1
    oh = (h + 2 * pad - k) // stride + 1
    ow = (w + 2 * pad - k) // stride + 1
    cols = []
    for kd in range(k):
        for kh in range(k):
            for kw in range(k):
                cols.append(
                    xp[:,
                       kd:kd + stride * od:stride,
                       kh:kh + stride * oh:stride,
                       kw:kw + stride * ow:stride, :]
                )
    patches = jnp.stack(cols, axis=-1)                       # (N,OD,OH,OW,C,27)
    kdim = c * k * k * k
    patches = patches.reshape(n, od, oh, ow, kdim)
    if pool == "max":
        assert od % 2 == 0 and oh % 2 == 0 and ow % 2 == 0
        patches = patches.reshape(n, od // 2, 2, oh // 2, 2, ow // 2, 2, kdim)
        patches = jnp.transpose(patches, (0, 1, 3, 5, 2, 4, 6, 7))
        group = 8
    else:  # "mean" -> global average pool, one group per sample
        group = od * oh * ow
    patches = patches.reshape(n * od * oh * ow, kdim)
    return patches, (n, od, oh, ow), group


def _pick_row_tile(rows, group, target=512):
    """Largest divisor of `rows` that is <= ~target and a multiple of `group`."""
    tr = min(rows, max(target, group))
    tr -= tr % group
    while rows % tr != 0:
        tr -= group
    return tr


def conv_block(x_ndhwc, w, b, gamma, beta, mean, var, *, stride, pool, eps=1e-5):
    """Conv3d(k=3,pad=1,stride) + BN3d + ReLU + {MaxPool3d(2) | global avg pool}.

    Returns NDHWC pooled activations for pool=="max", or (N, Cout) for "mean".
    """
    cout, cin, k, _, _ = w.shape
    patches, (n, od, oh, ow), group = _im2col_grouped(x_ndhwc, k, stride, 1, pool)
    rows, kdim = patches.shape
    out_rows = rows // group

    # Fold conv bias + BN (running stats) into the weight matrix / shift.
    scale = gamma * jax.lax.rsqrt(var + eps)                         # (Cout,)
    w_mat = w.reshape(cout, cin * k * k * k).T * scale[None, :]      # (K, Cout)
    shift = b * scale + beta - mean * scale                          # (Cout,)

    # Lane-pad Cout -> 128 for lane-dense stores / full MXU lane occupancy.
    w_mat = jnp.pad(w_mat, ((0, 0), (0, CP - cout)))
    shift = jnp.pad(shift, (0, CP - cout)).reshape(1, CP)

    # bf16 MXU operands, f32 accumulation; epilogue math stays f32.
    patches = patches.astype(jnp.bfloat16)
    w_mat = w_mat.astype(jnp.bfloat16)

    tr = _pick_row_tile(rows, group)
    grid = (rows // tr,)

    kernel = functools.partial(_conv_bn_relu_pool_kernel, group=group, pool=pool)
    cost = pl.CostEstimate(
        flops=2 * rows * kdim * CP,
        transcendentals=0,
        bytes_accessed=int(patches.size * 2 + w_mat.size * 2
                           + shift.size * 4 + out_rows * CP * 4),
    )

    out = pl.pallas_call(
        kernel,
        out_shape=jax.ShapeDtypeStruct((out_rows, CP), jnp.float32),
        grid_spec=pltpu.PrefetchScalarGridSpec(
            num_scalar_prefetch=0,
            grid=grid,
            in_specs=[
                pl.BlockSpec((tr, kdim), lambda i: (i, 0)),     # patch row tile
                pl.BlockSpec((kdim, CP), lambda i: (0, 0)),     # resident weights
                pl.BlockSpec((1, CP), lambda i: (0, 0)),        # resident shift
            ],
            out_specs=pl.BlockSpec((tr // group, CP), lambda i: (i, 0)),
        ),
        compiler_params=pltpu.CompilerParams(
            dimension_semantics=("parallel",),        # shard rows across TCs (v7x)
            vmem_limit_bytes=32 * 1024 * 1024,        # safe on v7x's 64 MiB VMEM
        ),
        cost_estimate=cost,
    )(patches, w_mat, shift)

    out = out[:, :cout]                                # drop lane padding
    if pool == "mean":
        return out                                     # (N, Cout), globally pooled
    od2, oh2, ow2 = od // 2, oh // 2, ow // 2
    return out.reshape(n, od2, oh2, ow2, cout)         # channels-last NDHWC


def head_mlp(pooled, w1, b1, w2, b2):
    """Linear(64,32) + ReLU + [Dropout(0.5)=identity, eval] + Linear(32,1).

    Kept in plain XLA per perf review: N=2 / sub-vreg matmuls — pallas_call
    fixed overhead would exceed the compute.
    """
    h = jnp.maximum(pooled @ w1 + b1, 0.0)
    return h @ w2 + b2


# ----------------------------------------------------------------------------
# Parameter initialization (deterministic, synthetic)
# ----------------------------------------------------------------------------
def init_params(key):
    keys = jax.random.split(key, 16)
    p = {}

    def conv_p(kw, kb, cout, cin):
        fan_in = cin * 27
        w = jax.random.normal(kw, (cout, cin, 3, 3, 3), jnp.float32) * (1.0 / jnp.sqrt(fan_in))
        b = jax.random.normal(kb, (cout,), jnp.float32) * 0.01
        return w, b

    def bn_p(kg, kb, c):
        gamma = 1.0 + 0.1 * jax.random.normal(kg, (c,), jnp.float32)
        beta = 0.1 * jax.random.normal(kb, (c,), jnp.float32)
        mean = 0.05 * jax.random.normal(jax.random.fold_in(kg, 7), (c,), jnp.float32)
        var = 1.0 + 0.1 * jnp.abs(jax.random.normal(jax.random.fold_in(kb, 7), (c,), jnp.float32))
        return gamma, beta, mean, var

    p["conv1_w"], p["conv1_b"] = conv_p(keys[0], keys[1], 16, 4)
    p["bn1"] = bn_p(keys[2], keys[3], 16)
    p["conv2_w"], p["conv2_b"] = conv_p(keys[4], keys[5], 32, 16)
    p["bn2"] = bn_p(keys[6], keys[7], 32)
    p["conv3_w"], p["conv3_b"] = conv_p(keys[8], keys[9], 64, 32)
    p["bn3"] = bn_p(keys[10], keys[11], 64)

    p["fc1_w"] = jax.random.normal(keys[12], (64, 32), jnp.float32) * (1.0 / jnp.sqrt(64))
    p["fc1_b"] = 0.01 * jax.random.normal(keys[13], (32,), jnp.float32)
    p["fc2_w"] = jax.random.normal(keys[14], (32, 1), jnp.float32) * (1.0 / jnp.sqrt(32))
    p["fc2_b"] = 0.01 * jax.random.normal(keys[15], (1,), jnp.float32)
    return p


# ----------------------------------------------------------------------------
# Full forward pass
# ----------------------------------------------------------------------------
@jax.jit
def simple_conv3d_net(x_ncdhw, p):
    # Single layout conversion at the model boundary; everything after is
    # channels-last (NDHWC / (rows, C)).
    x = jnp.transpose(x_ncdhw, (0, 2, 3, 4, 1))                                   # NDHWC
    g1, b1, m1, v1 = p["bn1"]
    g2, b2, m2, v2 = p["bn2"]
    g3, b3, m3, v3 = p["bn3"]

    x = conv_block(x, p["conv1_w"], p["conv1_b"], g1, b1, m1, v1,
                   stride=2, pool="max")     # (N, 4, 4, 4, 16)   conv+bn+relu+maxpool
    x = conv_block(x, p["conv2_w"], p["conv2_b"], g2, b2, m2, v2,
                   stride=1, pool="max")     # (N, 2, 2, 2, 32)   conv+bn+relu+maxpool
    pooled = conv_block(x, p["conv3_w"], p["conv3_b"], g3, b3, m3, v3,
                        stride=1, pool="mean")  # (N, 64)  conv+bn+relu+global avg pool
    return head_mlp(pooled, p["fc1_w"], p["fc1_b"], p["fc2_w"], p["fc2_b"])       # (N, 1)


if __name__ == "__main__":
    key = jax.random.PRNGKey(0)
    k_x, k_p = jax.random.split(key)
    x = jax.random.normal(k_x, (2, 4, 16, 16, 16), jnp.float32)  # NCDHW
    params = init_params(k_p)

    out = simple_conv3d_net(x, params)
    out = jax.block_until_ready(out)
    assert out.shape == (2, 1) and out.dtype == jnp.float32
    print("KERNEL_OK")
</pallas_src>

<mosaic_0001>
module attributes {stable_mosaic.version = 11 : i64} {
  func.func @_conv_bn_relu_pool_kernel(%arg0: i32, %arg1: memref<512x108xbf16, #tpu.memory_space<vmem>>, %arg2: memref<108x128xbf16, #tpu.memory_space<vmem>>, %arg3: memref<1x128xf32, #tpu.memory_space<vmem>>, %arg4: memref<64x128xf32, #tpu.memory_space<vmem>>) attributes {dimension_semantics = [#tpu.dimension_semantics<parallel>], iteration_bounds = array<i64: 2>, scalar_prefetch = 0 : i64, scratch_operands = 0 : i64, tpu.core_type = #tpu.core_type<tc>, window_params = [{transform_indices = @transform_0, window_bounds = array<i64: 512, 108>}, {pipeline_mode = #tpu.pipeline_mode<synchronous>, transform_indices = @transform_1, window_bounds = array<i64: 108, 128>}, {pipeline_mode = #tpu.pipeline_mode<synchronous>, transform_indices = @transform_2, window_bounds = array<i64: 1, 128>}, {transform_indices = @transform_3, window_bounds = array<i64: 64, 128>}]} {
    %c0 = arith.constant 0 : index
    %c0_0 = arith.constant 0 : index
    %0 = vector.load %arg1[%c0, %c0_0] : memref<512x108xbf16, #tpu.memory_space<vmem>>, vector<512x108xbf16>
    %c0_1 = arith.constant 0 : index
    %c0_2 = arith.constant 0 : index
    %1 = vector.load %arg2[%c0_1, %c0_2] : memref<108x128xbf16, #tpu.memory_space<vmem>>, vector<108x128xbf16>
    %cst = arith.constant dense<0.000000e+00> : vector<512x128xf32>
    %2 = tpu.matmul %0, %1, %cst {dimension_numbers = #tpu.dot_dimension_numbers<[1], [0], [0], [1], [0, 0, 1, 1], [], []>} : vector<512x108xbf16>, vector<108x128xbf16>, vector<512x128xf32> -> vector<512x128xf32>
    %c0_3 = arith.constant 0 : index
    %c0_4 = arith.constant 0 : index
    %3 = vector.load %arg3[%c0_3, %c0_4] : memref<1x128xf32, #tpu.memory_space<vmem>>, vector<1x128xf32>
    %4 = vector.broadcast %3 : vector<1x128xf32> to vector<512x128xf32>
    %5 = arith.addf %2, %4 : vector<512x128xf32>
    %cst_5 = arith.constant 0.000000e+00 : f32
    %6 = vector.broadcast %cst_5 : f32 to vector<512x128xf32>
    %7 = arith.maximumf %5, %6 : vector<512x128xf32>
    %8 = vector.shape_cast %7 : vector<512x128xf32> to vector<64x8x128xf32>
    %cst_6 = arith.constant dense<0xFF800000> : vector<64x128xf32>
    %9 = vector.multi_reduction <maximumf>, %8, %cst_6 [1] : vector<64x8x128xf32> to vector<64x128xf32>
    %c0_7 = arith.constant 0 : index
    %c0_8 = arith.constant 0 : index
    %10 = vector.load %arg4[%c0_7, %c0_8] : memref<64x128xf32, #tpu.memory_space<vmem>>, vector<64x128xf32>
    tpu.vector_store %arg4[%c0_7, %c0_8], %9 {strides = array<i32>} : memref<64x128xf32, #tpu.memory_space<vmem>>, vector<64x128xf32>,
    return
  }
  func.func @transform_0(%arg0: i32) -> (i32, i32) {
    %c0_i32 = arith.constant 0 : i32
    %c0_i32_0 = arith.constant 0 : i32
    return %arg0, %c0_i32 : i32, i32
  }
  func.func @transform_1(%arg0: i32) -> (i32, i32) {
    %c0_i32 = arith.constant 0 : i32
    %c0_i32_0 = arith.constant 0 : i32
    %c0_i32_1 = arith.constant 0 : i32
    return %c0_i32, %c0_i32_0 : i32, i32
  }
  func.func @transform_2(%arg0: i32) -> (i32, i32) {
    %c0_i32 = arith.constant 0 : i32
    %c0_i32_0 = arith.constant 0 : i32
    %c0_i32_1 = arith.constant 0 : i32
    return %c0_i32, %c0_i32_0 : i32, i32
  }
  func.func @transform_3(%arg0: i32) -> (i32, i32) {
    %c0_i32 = arith.constant 0 : i32
    %c0_i32_0 = arith.constant 0 : i32
    return %arg0, %c0_i32 : i32, i32
  }
}

module attributes {stable_mosaic.version = 11 : i64} {
  func.func @_conv_bn_relu_pool_kernel(%arg0: i32, %arg1: memref<128x432xbf16, #tpu.memory_space<vmem>>, %arg2: memref<432x128xbf16, #tpu.memory_space<vmem>>, %arg3: memref<1x128xf32, #tpu.memory_space<vmem>>, %arg4: memref<16x128xf32, #tpu.memory_space<vmem>>) attributes {dimension_semantics = [#tpu.dimension_semantics<parallel>], iteration_bounds = array<i64: 1>, scalar_prefetch = 0 : i64, scratch_operands = 0 : i64, tpu.core_type = #tpu.core_type<tc>, window_params = [{transform_indices = @transform_0, window_bounds = array<i64: 128, 432>}, {pipeline_mode = #tpu.pipeline_mode<synchronous>, transform_indices = @transform_1, window_bounds = array<i64: 432, 128>}, {pipeline_mode = #tpu.pipeline_mode<synchronous>, transform_indices = @transform_2, window_bounds = array<i64: 1, 128>}, {transform_indices = @transform_3, window_bounds = array<i64: 16, 128>}]} {
    %c0 = arith.constant 0 : index
    %c0_0 = arith.constant 0 : index
    %0 = vector.load %arg1[%c0, %c0_0] : memref<128x432xbf16, #tpu.memory_space<vmem>>, vector<128x432xbf16>
    %c0_1 = arith.constant 0 : index
    %c0_2 = arith.constant 0 : index
    %1 = vector.load %arg2[%c0_1, %c0_2] : memref<432x128xbf16, #tpu.memory_space<vmem>>, vector<432x128xbf16>
    %cst = arith.constant dense<0.000000e+00> : vector<128x128xf32>
    %2 = tpu.matmul %0, %1, %cst {dimension_numbers = #tpu.dot_dimension_numbers<[1], [0], [0], [1], [0, 0, 1, 1], [], []>} : vector<128x432xbf16>, vector<432x128xbf16>, vector<128x128xf32> -> vector<128x128xf32>
    %c0_3 = arith.constant 0 : index
    %c0_4 = arith.constant 0 : index
    %3 = vector.load %arg3[%c0_3, %c0_4] : memref<1x128xf32, #tpu.memory_space<vmem>>, vector<1x128xf32>
    %4 = vector.broadcast %3 : vector<1x128xf32> to vector<128x128xf32>
    %5 = arith.addf %2, %4 : vector<128x128xf32>
    %cst_5 = arith.constant 0.000000e+00 : f32
    %6 = vector.broadcast %cst_5 : f32 to vector<128x128xf32>
    %7 = arith.maximumf %5, %6 : vector<128x128xf32>
    %8 = vector.shape_cast %7 : vector<128x128xf32> to vector<16x8x128xf32>
    %cst_6 = arith.constant dense<0xFF800000> : vector<16x128xf32>
    %9 = vector.multi_reduction <maximumf>, %8, %cst_6 [1] : vector<16x8x128xf32> to vector<16x128xf32>
    %c0_7 = arith.constant 0 : index
    %c0_8 = arith.constant 0 : index
    %10 = vector.load %arg4[%c0_7, %c0_8] : memref<16x128xf32, #tpu.memory_space<vmem>>, vector<16x128xf32>
    tpu.vector_store %arg4[%c0_7, %c0_8], %9 {strides = array<i32>} : memref<16x128xf32, #tpu.memory_space<vmem>>, vector<16x128xf32>,
    return
  }
  func.func @transform_0(%arg0: i32) -> (i32, i32) {
    %c0_i32 = arith.constant 0 : i32
    %c0_i32_0 = arith.constant 0 : i32
    return %arg0, %c0_i32 : i32, i32
  }
  func.func @transform_1(%arg0: i32) -> (i32, i32) {
    %c0_i32 = arith.constant 0 : i32
    %c0_i32_0 = arith.constant 0 : i32
    %c0_i32_1 = arith.constant 0 : i32
    return %c0_i32, %c0_i32_0 : i32, i32
  }
  func.func @transform_2(%arg0: i32) -> (i32, i32) {
    %c0_i32 = arith.constant 0 : i32
    %c0_i32_0 = arith.constant 0 : i32
    %c0_i32_1 = arith.constant 0 : i32
    return %c0_i32, %c0_i32_0 : i32, i32
  }
  func.func @transform_3(%arg0: i32) -> (i32, i32) {
    %c0_i32 = arith.constant 0 : i32
    %c0_i32_0 = arith.constant 0 : i32
    return %arg0, %c0_i32 : i32, i32
  }
}

module attributes {stable_mosaic.version = 11 : i64} {
  func.func @_conv_bn_relu_pool_kernel(%arg0: i32, %arg1: memref<16x864xbf16, #tpu.memory_space<vmem>>, %arg2: memref<864x128xbf16, #tpu.memory_space<vmem>>, %arg3: memref<1x128xf32, #tpu.memory_space<vmem>>, %arg4: memref<2x128xf32, #tpu.memory_space<vmem>>) attributes {dimension_semantics = [#tpu.dimension_semantics<parallel>], iteration_bounds = array<i64: 1>, scalar_prefetch = 0 : i64, scratch_operands = 0 : i64, tpu.core_type = #tpu.core_type<tc>, window_params = [{transform_indices = @transform_0, window_bounds = array<i64: 16, 864>}, {pipeline_mode = #tpu.pipeline_mode<synchronous>, transform_indices = @transform_1, window_bounds = array<i64: 864, 128>}, {pipeline_mode = #tpu.pipeline_mode<synchronous>, transform_indices = @transform_2, window_bounds = array<i64: 1, 128>}, {transform_indices = @transform_3, window_bounds = array<i64: 2, 128>}]} {
    %c0 = arith.constant 0 : index
    %c0_0 = arith.constant 0 : index
    %0 = vector.load %arg1[%c0, %c0_0] : memref<16x864xbf16, #tpu.memory_space<vmem>>, vector<16x864xbf16>
    %c0_1 = arith.constant 0 : index
    %c0_2 = arith.constant 0 : index
    %1 = vector.load %arg2[%c0_1, %c0_2] : memref<864x128xbf16, #tpu.memory_space<vmem>>, vector<864x128xbf16>
    %cst = arith.constant dense<0.000000e+00> : vector<16x128xf32>
    %2 = tpu.matmul %0, %1, %cst {dimension_numbers = #tpu.dot_dimension_numbers<[1], [0], [0], [1], [0, 0, 1, 1], [], []>} : vector<16x864xbf16>, vector<864x128xbf16>, vector<16x128xf32> -> vector<16x128xf32>
    %c0_3 = arith.constant 0 : index
    %c0_4 = arith.constant 0 : index
    %3 = vector.load %arg3[%c0_3, %c0_4] : memref<1x128xf32, #tpu.memory_space<vmem>>, vector<1x128xf32>
    %4 = vector.broadcast %3 : vector<1x128xf32> to vector<16x128xf32>
    %5 = arith.addf %2, %4 : vector<16x128xf32>
    %cst_5 = arith.constant 0.000000e+00 : f32
    %6 = vector.broadcast %cst_5 : f32 to vector<16x128xf32>
    %7 = arith.maximumf %5, %6 : vector<16x128xf32>
    %8 = vector.shape_cast %7 : vector<16x128xf32> to vector<2x8x128xf32>
    %cst_6 = arith.constant dense<0.000000e+00> : vector<2x128xf32>
    %9 = vector.multi_reduction <add>, %8, %cst_6 [1] : vector<2x8x128xf32> to vector<2x128xf32>
    %cst_7 = arith.constant 8.000000e+00 : f32
    %10 = vector.broadcast %cst_7 : f32 to vector<2x128xf32>
    %11 = arith.divf %9, %10 : vector<2x128xf32>
    %c0_8 = arith.constant 0 : index
    %c0_9 = arith.constant 0 : index
    %12 = vector.load %arg4[%c0_8, %c0_9] : memref<2x128xf32, #tpu.memory_space<vmem>>, vector<2x128xf32>
    tpu.vector_store %arg4[%c0_8, %c0_9], %11 {strides = array<i32>} : memref<2x128xf32, #tpu.memory_space<vmem>>, vector<2x128xf32>,
    return
  }
  func.func @transform_0(%arg0: i32) -> (i32, i32) {
    %c0_i32 = arith.constant 0 : i32
    %c0_i32_0 = arith.constant 0 : i32
    return %arg0, %c0_i32 : i32, i32
  }
  func.func @transform_1(%arg0: i32) -> (i32, i32) {
    %c0_i32 = arith.constant 0 : i32
    %c0_i32_0 = arith.constant 0 : i32
    %c0_i32_1 = arith.constant 0 : i32
    return %c0_i32, %c0_i32_0 : i32, i32
  }
  func.func @transform_2(%arg0: i32) -> (i32, i32) {
    %c0_i32 = arith.constant 0 : i32
    %c0_i32_0 = arith.constant 0 : i32
    %c0_i32_1 = arith.constant 0 : i32
    return %c0_i32, %c0_i32_0 : i32, i32
  }
  func.func @transform_3(%arg0: i32) -> (i32, i32) {
    %c0_i32 = arith.constant 0 : i32
    %c0_i32_0 = arith.constant 0 : i32
    return %arg0, %c0_i32 : i32, i32
  }
}

</mosaic_0001>

<llo_original>
// kernel: simple_conv3d_net.3
$region0: #{simple_conv3d_net.3}
  #allocation0 [shape = 'u32[]', space=smem, size = 0x4, offset = 0x4, fixed_abs, tag = 'smem constant byte address 0x4 - core index']
  #allocation1 [shape = 'u32[144,128]{1,0:T(1,128)}', space=vmem, size = 0x12000, scoped, tag = 'internal scratch']
  %s0 = inlined_call_operand.vmem [shape: bf16[1024,108], index: 0, kind: input, shape index: {}]
  %s1 = inlined_call_operand.vmem [shape: bf16[108,128], index: 1, kind: input, shape index: {}]
  %s2 = inlined_call_operand.vmem [shape: f32[1,128], index: 2, kind: input, shape index: {}]
  %s3 = inlined_call_operand.vmem [shape: f32[128,128], index: 3, kind: output, shape index: {}]
  %s4 = sld [smem:[#allocation0]]
  $region45: #{simple_conv3d_net.3} parent=0
    _
  %s6 = ssub.s32 1, %s4
  %s7 = scalar_select 0, %s6, %s4
  loop: start=0, step=1, limit=4
  $region2: #{simple_conv3d_net.3} parent=0 // loop_pre_header
    _
  $region3: #{simple_conv3d_net.3} parent=0 // loop_header
    %s9 = sphi 0, %s13
    %p10 = scmp.ge.s32.totalorder %s9, 4
    %s19 = sphi 0, %s21
    %s22 = sphi 0, %s19
    %s23 = sphi 0, %s22
    %s39 = sphi 0, %s23
    %s43 = sphi 0, %s43
    %s45 = sphi 0, %s43
    %s46 = sphi 0, %s45
    %s60 = sphi 0, %s46
    %s64 = sphi 0, %s64
    %s66 = sphi 0, %s64
    %s67 = sphi 0, %s66
    %s81 = sphi 0, %s67
    %s87 = sphi 0, %s89
    %s90 = sphi 0, %s87
    %s91 = sphi 0, %s90
    %s107 = sphi 0, %s91
  $region4: #{simple_conv3d_net.3} parent=0 // loop_header_branch
    %12 = sbr.rel (%p10) target = $region8
  $region5: #{simple_conv3d_net.3} parent=0 // loop_body
    %s14 = ssub.s32 %s9, 1
    %s15 = ssub.s32 %s9, 2
    %s16 = sadd.s32 %s9, 1
    %s17 = ssub.s32 %s9, %s16
    %p18 = scmp.eq.s32.totalorder %s17, 0
    %s20 = sadd.s32 %s19, 1
    %s21 = scalar_select %p18, %s19, %s20
    %p24 = pneg %p18
    %p25 = scmp.eq.s32.totalorder %s9, 1
    %p26 = por %p24, %p25
    %p27 = scmp.ne.s32.totalorder %s19, %s22
    %p28 = scmp.eq.s32.totalorder %s9, 0
    %p29 = por %p27, %p28
    %p30 = scmp.ne.s32.totalorder %s19, %s22
    %p31 = scmp.eq.s32.totalorder %s14, 1
    %p32 = por %p30, %p31
    %p33 = scmp.ne.s32.totalorder %s22, %s23
    %p34 = scmp.eq.s32.totalorder %s14, 0
    %p35 = por %p33, %p34
    %p36 = scmp.ne.s32.totalorder %s22, %s23
    %p37 = scmp.eq.s32.totalorder %s15, 1
    %p38 = por %p36, %p37
    %p40 = scmp.ne.s32.totalorder %s23, %s39
    %p41 = scmp.eq.s32.totalorder %s15, 0
    %p42 = por %p40, %p41
    %s44 = sadd.s32 %s43, 1
    %p47 = scmp.eq.s32.totalorder %s9, 1
    %p48 = scmp.ne.s32.totalorder %s43, %s45
    %p49 = scmp.eq.s32.totalorder %s9, 0
    %p50 = por %p48, %p49
    %p51 = scmp.ne.s32.totalorder %s43, %s45
    %p52 = scmp.eq.s32.totalorder %s14, 1
    %p53 = por %p51, %p52
    %p54 = scmp.ne.s32.totalorder %s45, %s46
    %p55 = scmp.eq.s32.totalorder %s14, 0
    %p56 = por %p54, %p55
    %p57 = scmp.ne.s32.totalorder %s45, %s46
    %p58 = scmp.eq.s32.totalorder %s15, 1
    %p59 = por %p57, %p58
    %p61 = scmp.ne.s32.totalorder %s46, %s60
    %p62 = scmp.eq.s32.totalorder %s15, 0
    %p63 = por %p61, %p62
    %s65 = sadd.s32 %s64, 1
    %p68 = scmp.eq.s32.totalorder %s9, 1
    %p69 = scmp.ne.s32.totalorder %s64, %s66
    %p70 = scmp.eq.s32.totalorder %s9, 0
    %p71 = por %p69, %p70
    %p72 = scmp.ne.s32.totalorder %s64, %s66
    %p73 = scmp.eq.s32.totalorder %s14, 1
    %p74 = por %p72, %p73
    %p75 = scmp.ne.s32.totalorder %s66, %s67
    %p76 = scmp.eq.s32.totalorder %s14, 0
    %p77 = por %p75, %p76
    %p78 = scmp.ne.s32.totalorder %s66, %s67
    %p79 = scmp.eq.s32.totalorder %s15, 1
    %p80 = por %p78, %p79
    %p82 = scmp.ne.s32.totalorder %s67, %s81
    %p83 = scmp.eq.s32.totalorder %s15, 0
    %p84 = por %p82, %p83
    %s85 = ssub.s32 %s9, %s16
    %p86 = scmp.eq.s32.totalorder %s85, 0
    %s88 = sadd.s32 %s87, 1
    %s89 = scalar_select %p86, %s87, %s88
    %p92 = pneg %p86
    %p93 = scmp.eq.s32.totalorder %s9, 1
    %p94 = por %p92, %p93
    %p95 = scmp.ne.s32.totalorder %s87, %s90
    %p96 = scmp.eq.s32.totalorder %s9, 0
    %p97 = por %p95, %p96
    %p98 = scmp.ne.s32.totalorder %s87, %s90
    %p99 = scmp.eq.s32.totalorder %s14, 1
    %p100 = por %p98, %p99
    %p101 = scmp.ne.s32.totalorder %s90, %s91
    %p102 = scmp.eq.s32.totalorder %s14, 0
    %p103 = por %p101, %p102
    %p104 = scmp.ne.s32.totalorder %s90, %s91
    %p105 = scmp.eq.s32.totalorder %s15, 1
    %p106 = por %p104, %p105
    %p108 = scmp.ne.s32.totalorder %s91, %s107
    %p109 = scmp.eq.s32.totalorder %s15, 0
    %p110 = por %p108, %p109
    %p111 = scmp.le.s32.totalorder 1, %s9
    %p112 = scmp.lt.s32.totalorder %s9, 3
    %p113 = pnand %p111, %p112
    %p114 = pneg %p113
    // Predicated region
    $region9: #{simple_conv3d_net.3} parent=5 // pred_check
      _
    $region10: #{simple_conv3d_net.3} parent=5 // pred_check_branch
      %116 = sbr.rel (%p113) target = $region12
    $region11: #{simple_conv3d_net.3} parent=5 // pred_region
      %s117 = ssub.s32 %s9, 1
      // Predicated region
      $region13: #{simple_conv3d_net.3} parent=11 // pred_check
        %p118 = pneg %p56
      $region14: #{simple_conv3d_net.3} parent=11 // pred_check_branch
        %120 = sbr.rel (%p118) target = $region16
      $region15: #{simple_conv3d_net.3} parent=11 // pred_region
        _
      $region16: #{simple_conv3d_net.3} parent=11 // pred_fallthru
        _
      // Predicated region
      $region17: #{simple_conv3d_net.3} parent=11 // pred_check
        %p121 = pneg %p77
      $region18: #{simple_conv3d_net.3} parent=11 // pred_check_branch
        %123 = sbr.rel (%p121) target = $region20
      $region19: #{simple_conv3d_net.3} parent=11 // pred_region
        _
      $region20: #{simple_conv3d_net.3} parent=11 // pred_fallthru
        _
    $region12: #{simple_conv3d_net.3} parent=5 // pred_fallthru
      _
    %p124 = scmp.lt.s32.totalorder %s9, 2
    // Predicated region
    $region21: #{simple_conv3d_net.3} parent=5 // pred_check
      %p125 = pneg %p124
    $region22: #{simple_conv3d_net.3} parent=5 // pred_check_branch
      %127 = sbr.rel (%p125) target = $region24
    $region23: #{simple_conv3d_net.3} parent=5 // pred_region
      // Predicated region
      $region25: #{simple_conv3d_net.3} parent=23 // pred_check
        %p128 = pneg %p29
      $region26: #{simple_conv3d_net.3} parent=23 // pred_check_branch
        %130 = sbr.rel (%p128) target = $region28
      $region27: #{simple_conv3d_net.3} parent=23 // pred_region
        %s131 = smul.u32 64, %s9
        %p132 = scmp.lt.s32.totalorder %s131, 127
        %s133 = scalar_select %p132, %s131, 127
        %s134 = smul.addr %s133, 4
        %s135 = scalar_lea.vmem %s0, %s134
        %s136 = smul.u32 64, %s9
      $region28: #{simple_conv3d_net.3} parent=23 // pred_fallthru
        _
    $region24: #{simple_conv3d_net.3} parent=5 // pred_fallthru
      _
    %p137 = scmp.le.s32.totalorder 1, %s9
    %p138 = scmp.lt.s32.totalorder %s9, 3
    %p139 = pnand %p137, %p138
    %p140 = pneg %p139
    // Predicated region
    $region29: #{simple_conv3d_net.3} parent=5 // pred_check
      _
    $region30: #{simple_conv3d_net.3} parent=5 // pred_check_branch
      %142 = sbr.rel (%p139) target = $region32
    $region31: #{simple_conv3d_net.3} parent=5 // pred_region
      %s143 = ssub.s32 %s9, 1
      %s144 = smul.u32 64, %s14
      %p145 = scmp.lt.s32.totalorder %s144, 127
      %s146 = scalar_select %p145, %s144, 127
      %s147 = smul.addr %s146, 4
      %s148 = scalar_lea.vmem %s0, %s147
      %p149 = pneg %p35
      %p150 = pneg %p32
      %p151 = pneg %p56
      %p152 = pneg %p53
      %p153 = pneg %p77
      %p154 = pneg %p74
      %p155 = pneg %p103
      %p156 = pneg %p100
      %s157 = smul.u32 8, %s14
      %p158 = scmp.lt.s32.totalorder %s157, 15
      %s159 = scalar_select %p158, %s157, 15
      %s160 = smul.addr %s159, 8
      %s161 = scalar_lea.vmem %s3, %s160
      %s162 = smul.u32 64, %s14
      %p163 = scmp.lt.s32.totalorder %s162, 127
      %s164 = scalar_select %p163, %s162, 127
      %s165 = smul.addr %s164, 4
      %s166 = scalar_lea.vmem %s0, %s165
      %s167 = smul.u32 64, %s14
      %s168 = smul.u32 8, %s14
      %p169 = scmp.lt.s32.totalorder %s168, 15
      %s170 = scalar_select %p169, %s168, 15
      %s171 = smul.addr %s170, 8
      %s172 = scalar_lea.vmem %s3, %s171
      %s173 = smul.u32 8, %s14
      %v175 = vld [vmem:[%s166] sm:$0xf]
      %v176 = vld [vmem:[%s166 + $0x4] sm:$0xf]
      %v177 = vld [vmem:[%s166 + $0x8] sm:$0xf]
      %v178 = vld [vmem:[%s166 + $0xc] sm:$0xf]
      %v179 = vld [vmem:[%s166 + $0x10] sm:$0xf]
      %v180 = vld [vmem:[%s166 + $0x14] sm:$0xf]
      %v181 = vld [vmem:[%s166 + $0x18] sm:$0xf]
      %v182 = vld [vmem:[%s166 + $0x1c] sm:$0xf]
      %v183 = vld [vmem:[%s166 + $0x20] sm:$0xf]
      %v184 = vld [vmem:[%s166 + $0x24] sm:$0xf]
      %v185 = vld [vmem:[%s166 + $0x28] sm:$0xf]
      %v186 = vld [vmem:[%s166 + $0x2c] sm:$0xf]
      %v187 = vld [vmem:[%s166 + $0x30] sm:$0xf]
      %v188 = vld [vmem:[%s166 + $0x34] sm:$0xf]
      %v189 = vld [vmem:[%s166 + $0x38] sm:$0xf]
      %v190 = vld [vmem:[%s166 + $0x3c] sm:$0xf]
      %v191 = vld [vmem:[%s166 + $0x40] sm:$0xf]
      %v192 = vld [vmem:[%s166 + $0x44] sm:$0xf]
      %v193 = vld [vmem:[%s166 + $0x48] sm:$0xf]
      %v194 = vld [vmem:[%s166 + $0x4c] sm:$0xf]
      %v195 = vld [vmem:[%s166 + $0x50] sm:$0xf]
      %v196 = vld [vmem:[%s166 + $0x54] sm:$0xf]
      %v197 = vld [vmem:[%s166 + $0x58] sm:$0xf]
      %v198 = vld [vmem:[%s166 + $0x5c] sm:$0xf]
      %v199 = vld [vmem:[%s166 + $0x60] sm:$0xf]
      %v200 = vld [vmem:[%s166 + $0x64] sm:$0xf]
      %v201 = vld [vmem:[%s166 + $0x68] sm:$0xf]
      %v202 = vld [vmem:[%s166 + $0x6c] sm:$0xf]
      %v203 = vld [vmem:[%s166 + $0x70] sm:$0xf]
      %v204 = vld [vmem:[%s166 + $0x74] sm:$0xf]
      %v205 = vld [vmem:[%s166 + $0x78] sm:$0xf]
      %v206 = vld [vmem:[%s166 + $0x7c] sm:$0xf]
      %v207 = vld [vmem:[%s166 + $0x80] sm:$0xf]
      %v208 = vld [vmem:[%s166 + $0x84] sm:$0xf]
      %v209 = vld [vmem:[%s166 + $0x88] sm:$0xf]
      %v210 = vld [vmem:[%s166 + $0x8c] sm:$0xf]
      %v211 = vld [vmem:[%s166 + $0x90] sm:$0xf]
      %v212 = vld [vmem:[%s166 + $0x94] sm:$0xf]
      %v213 = vld [vmem:[%s166 + $0x98] sm:$0xf]
      %v214 = vld [vmem:[%s166 + $0x9c] sm:$0xf]
      %v215 = vld [vmem:[%s166 + $0xa0] sm:$0xf]
      %v216 = vld [vmem:[%s166 + $0xa4] sm:$0xf]
      %v217 = vld [vmem:[%s166 + $0xa8] sm:$0xf]
      %v218 = vld [vmem:[%s166 + $0xac] sm:$0xf]
      %v219 = vld [vmem:[%s166 + $0xb0] sm:$0xf]
      %v220 = vld [vmem:[%s166 + $0xb4] sm:$0xf]
      %v221 = vld [vmem:[%s166 + $0xb8] sm:$0xf]
      %v222 = vld [vmem:[%s166 + $0xbc] sm:$0xf]
      %v223 = vld [vmem:[%s166 + $0xc0] sm:$0xf]
      %v224 = vld [vmem:[%s166 + $0xc4] sm:$0xf]
      %v225 = vld [vmem:[%s166 + $0xc8] sm:$0xf]
      %v226 = vld [vmem:[%s166 + $0xcc] sm:$0xf]
      %v227 = vld [vmem:[%s166 + $0xd0] sm:$0xf]
      %v228 = vld [vmem:[%s166 + $0xd4] sm:$0xf]
      %v229 = vld [vmem:[%s166 + $0xd8] sm:$0xf]
      %v230 = vld [vmem:[%s166 + $0xdc] sm:$0xf]
      %v231 = vld [vmem:[%s166 + $0xe0] sm:$0xf]
      %v232 = vld [vmem:[%s166 + $0xe4] sm:$0xf]
      %v233 = vld [vmem:[%s166 + $0xe8] sm:$0xf]
      %v234 = vld [vmem:[%s166 + $0xec] sm:$0xf]
      %v235 = vld [vmem:[%s166 + $0xf0] sm:$0xf]
      %v236 = vld [vmem:[%s166 + $0xf4] sm:$0xf]
      %v237 = vld [vmem:[%s166 + $0xf8] sm:$0xf]
      %v238 = vld [vmem:[%s166 + $0xfc] sm:$0xf]
      %v239 = vld [vmem:[%s1] sm:$0xf]
      %v240 = vld [vmem:[%s1 + $0x4] sm:$0xf]
      %v241 = vld [vmem:[%s1 + $0x8] sm:$0xf]
      %v242 = vld [vmem:[%s1 + $0xc] sm:$0xf]
      %v243 = vld [vmem:[%s1 + $0x10] sm:$0xf]
      %v244 = vld [vmem:[%s1 + $0x14] sm:$0xf]
      %v245 = vld [vmem:[%s1 + $0x18] sm:$0xf]
      %v246 = vld [vmem:[%s1 + $0x1c] sm:$0xf]
      %v247 = vld [vmem:[%s1 + $0x20] sm:$0xf]
      %v248 = vld [vmem:[%s1 + $0x24] sm:$0xf]
      %v249 = vld [vmem:[%s1 + $0x28] sm:$0xf]
      %v250 = vld [vmem:[%s1 + $0x2c] sm:$0xf]
      %v251 = vld [vmem:[%s1 + $0x30] sm:$0xf]
      %v252 = vld [vmem:[%s1 + $0x34] sm:$0x3]
      %v253 = vld [vmem:[%s2] sm:$0x1]
      %v255 = vlaneseq
      %v256 = vshrl.u32 %v255, 7
      %v257 = vsub.s32 0, %v256
      %v258 = vrot.slane %v253, %v257
      %v324 = vunpack.c.l.b16 %v175
      %v325 = vunpack.c.l.b16 %v176
      %v326 = vunpack.c.l.b16 %v177
      %v327 = vunpack.c.l.b16 %v178
      %v328 = vunpack.c.l.b16 %v179
      %v329 = vunpack.c.l.b16 %v180
      %v330 = vunpack.c.l.b16 %v181
      %v331 = vunpack.c.l.b16 %v182
      %v332 = vunpack.c.l.b16 %v183
      %v333 = vunpack.c.l.b16 %v184
      %v334 = vunpack.c.l.b16 %v185
      %v335 = vunpack.c.l.b16 %v186
      %v336 = vunpack.c.l.b16 %v187
      %v337 = vunpack.c.l.b16 %v188
      %v338 = vunpack.c.l.b16 %v189
      %v339 = vunpack.c.l.b16 %v190
      %v340 = vunpack.c.l.b16 %v191
      %v341 = vunpack.c.l.b16 %v192
      %v342 = vunpack.c.l.b16 %v193
      %v343 = vunpack.c.l.b16 %v194
      %v344 = vunpack.c.l.b16 %v195
      %v345 = vunpack.c.l.b16 %v196
      %v346 = vunpack.c.l.b16 %v197
      %v347 = vunpack.c.l.b16 %v198
      %v348 = vunpack.c.l.b16 %v199
      %v349 = vunpack.c.l.b16 %v200
      %v350 = vunpack.c.l.b16 %v201
      %v351 = vunpack.c.l.b16 %v202
      %v352 = vunpack.c.l.b16 %v203
      %v353 = vunpack.c.l.b16 %v204
      %v354 = vunpack.c.l.b16 %v205
      %v355 = vunpack.c.l.b16 %v206
      %v356 = vunpack.c.l.b16 %v207
      %v357 = vunpack.c.l.b16 %v208
      %v358 = vunpack.c.l.b16 %v209
      %v359 = vunpack.c.l.b16 %v210
      %v360 = vunpack.c.l.b16 %v211
      %v361 = vunpack.c.l.b16 %v212
      %v362 = vunpack.c.l.b16 %v213
      %v363 = vunpack.c.l.b16 %v214
      %v364 = vunpack.c.l.b16 %v215
      %v365 = vunpack.c.l.b16 %v216
      %v366 = vunpack.c.l.b16 %v217
      %v367 = vunpack.c.l.b16 %v218
      %v368 = vunpack.c.l.b16 %v219
      %v369 = vunpack.c.l.b16 %v220
      %v370 = vunpack.c.l.b16 %v221
      %v371 = vunpack.c.l.b16 %v222
      %v372 = vunpack.c.l.b16 %v223
      %v373 = vunpack.c.l.b16 %v224
      %v374 = vunpack.c.l.b16 %v225
      %v375 = vunpack.c.l.b16 %v226
      %v376 = vunpack.c.l.b16 %v227
      %v377 = vunpack.c.l.b16 %v228
      %v378 = vunpack.c.l.b16 %v229
      %v379 = vunpack.c.l.b16 %v230
      %v380 = vunpack.c.l.b16 %v231
      %v381 = vunpack.c.l.b16 %v232
      %v382 = vunpack.c.l.b16 %v233
      %v383 = vunpack.c.l.b16 %v234
      %v384 = vunpack.c.l.b16 %v235
      %v385 = vunpack.c.l.b16 %v236
      %v386 = vunpack.c.l.b16 %v237
      %v387 = vunpack.c.l.b16 %v238
      %v388 = vpack.c.b16 %v325, %v324
      %v389 = vpack.c.b16 %v327, %v326
      %v390 = vpack.c.b16 %v329, %v328
      %v391 = vpack.c.b16 %v331, %v330
      %v392 = vpack.c.b16 %v333, %v332
      %v393 = vpack.c.b16 %v335, %v334
      %v394 = vpack.c.b16 %v337, %v336
      %v395 = vpack.c.b16 %v339, %v338
      %v396 = vpack.c.b16 %v341, %v340
      %v397 = vpack.c.b16 %v343, %v342
      %v398 = vpack.c.b16 %v345, %v344
      %v399 = vpack.c.b16 %v347, %v346
      %v400 = vpack.c.b16 %v349, %v348
      %v401 = vpack.c.b16 %v351, %v350
      %v402 = vpack.c.b16 %v353, %v352
      %v403 = vpack.c.b16 %v355, %v354
      %v404 = vpack.c.b16 %v357, %v356
      %v405 = vpack.c.b16 %v359, %v358
      %v406 = vpack.c.b16 %v361, %v360
      %v407 = vpack.c.b16 %v363, %v362
      %v408 = vpack.c.b16 %v365, %v364
      %v409 = vpack.c.b16 %v367, %v366
      %v410 = vpack.c.b16 %v369, %v368
      %v411 = vpack.c.b16 %v371, %v370
      %v412 = vpack.c.b16 %v373, %v372
      %v413 = vpack.c.b16 %v375, %v374
      %v414 = vpack.c.b16 %v377, %v376
      %v415 = vpack.c.b16 %v379, %v378
      %v416 = vpack.c.b16 %v381, %v380
      %v417 = vpack.c.b16 %v383, %v382
      %v418 = vpack.c.b16 %v385, %v384
      %v419 = vpack.c.b16 %v387, %v386
      %v434 = vunpack.c.l.b16 %v239
      %v435 = vunpack.c.l.b16 %v240
      %v436 = vunpack.c.l.b16 %v241
      %v437 = vunpack.c.l.b16 %v242
      %v438 = vunpack.c.l.b16 %v243
      %v439 = vunpack.c.l.b16 %v244
      %v440 = vunpack.c.l.b16 %v245
      %v441 = vunpack.c.l.b16 %v246
      %v442 = vunpack.c.l.b16 %v247
      %v443 = vunpack.c.l.b16 %v248
      %v444 = vunpack.c.l.b16 %v249
      %v445 = vunpack.c.l.b16 %v250
      %v446 = vunpack.c.l.b16 %v251
      %v447 = vunpack.c.l.b16 %v252
      %v448 = vpack.c.b16 %v435, %v434
      %v449 = vpack.c.b16 %v437, %v436
      %v450 = vpack.c.b16 %v439, %v438
      %v451 = vpack.c.b16 %v441, %v440
      %v452 = vpack.c.b16 %v443, %v442
      %v453 = vpack.c.b16 %v445, %v444
      %v454 = vpack.c.b16 %v447, %v446
      %vm461 = vcmask 883712
      %v463 = vsel %vm461, %v388, 0
      %v466 = vsel %vm461, %v389, 0
      %v469 = vsel %vm461, %v390, 0
      %v472 = vsel %vm461, %v391, 0
      %v475 = vsel %vm461, %v392, 0
      %v478 = vsel %vm461, %v393, 0
      %v481 = vsel %vm461, %v394, 0
      %v484 = vsel %vm461, %v395, 0
      %v487 = vsel %vm461, %v396, 0
      %v490 = vsel %vm461, %v397, 0
      %v493 = vsel %vm461, %v398, 0
      %v496 = vsel %vm461, %v399, 0
      %v499 = vsel %vm461, %v400, 0
      %v502 = vsel %vm461, %v401, 0
      %v505 = vsel %vm461, %v402, 0
      %v508 = vsel %vm461, %v403, 0
      %v511 = vsel %vm461, %v404, 0
      %v514 = vsel %vm461, %v405, 0
      %v517 = vsel %vm461, %v406, 0
      %v520 = vsel %vm461, %v407, 0
      %v523 = vsel %vm461, %v408, 0
      %v526 = vsel %vm461, %v409, 0
      %v529 = vsel %vm461, %v410, 0
      %v532 = vsel %vm461, %v411, 0
      %v535 = vsel %vm461, %v412, 0
      %v538 = vsel %vm461, %v413, 0
      %v541 = vsel %vm461, %v414, 0
      %v544 = vsel %vm461, %v415, 0
      %v547 = vsel %vm461, %v416, 0
      %v550 = vsel %vm461, %v417, 0
      %v553 = vsel %vm461, %v418, 0
      %v556 = vsel %vm461, %v419, 0
      %vm558 = vcmask 1045504
      %v560 = vsel %vm558, %v454, 0
      %562 = vmatprep.subr.bf16.mxu0 0
      %563 = vmatpush1.bf16.msra.mxu0 0
      %564 = vmatprep.subr.bf16.mxu0 0
      %565 = vmatpush1.bf16.msra.mxu0 %v560
      %566 = vmatprep.subr.bf16.mxu0 0
      %567 = vmatpush1.bf16.msra.mxu0 %v453
      %568 = vmatprep.subr.bf16.mxu0 0
      %569 = vmatpush1.bf16.msra.mxu0 %v452
      %570 = vmatprep.subr.bf16.mxu0 0
      %571 = vmatpush1.bf16.msra.mxu0 %v451
      %572 = vmatprep.subr.bf16.mxu0 0
      %573 = vmatpush1.bf16.msra.mxu0 %v450
      %574 = vmatprep.subr.bf16.mxu0 0
      %575 = vmatpush1.bf16.msra.mxu0 %v449
      %576 = vmatprep.subr.bf16.mxu0 0
      %577 = vmatpush1.bf16.msra.mxu0 %v448
      %578 = vmatprep.subr.bf16.mxu0 0
      %579 = vmatpush2.bf16.msra.mxu0 0
      %580 = vmatprep.subr.bf16.mxu0 0
      %581 = vmatpush2.bf16.msra.mxu0 0
      %582 = vmatprep.subr.bf16.mxu0 0
      %583 = vmatpush2.bf16.msra.mxu0 0
      %584 = vmatprep.subr.bf16.mxu0 0
      %585 = vmatpush2.bf16.msra.mxu0 0
      %586 = vmatprep.subr.bf16.mxu0 0
      %587 = vmatpush2.bf16.msra.mxu0 0
      %588 = vmatprep.subr.bf16.mxu0 0
      %589 = vmatpush2.bf16.msra.mxu0 0
      %590 = vmatprep.subr.bf16.mxu0 0
      %591 = vmatpush2.bf16.msra.mxu0 0
      %592 = vmatprep.subr.bf16.mxu0 0
      %593 = vmatpush2.bf16.msra.mxu0 0
      %594 = vmatprep.mubr.bf16.mxu0 0
      %595 = vmatmul.mubr.bf16.gmra.mxu0 %v463
      %v596 = vpop.f32.mrf.mxu0
      %v597 = vadd.f32 %v258, %v596
      %v598 = vpop.f32.mrf.mxu0
      %v599 = vpop.f32.mrf.mxu0
      %v600 = vadd.f32 %v258, %v599
      %v601 = vpop.f32.mrf.mxu0
      %602 = vmatprep.mubr.bf16.mxu0 0
      %603 = vmatmul.mubr.bf16.gmra.mxu0 %v466
      %v604 = vpop.f32.mrf.mxu0
      %v605 = vadd.f32 %v258, %v604
      %v606 = vpop.f32.mrf.mxu0
      %v607 = vpop.f32.mrf.mxu0
      %v608 = vadd.f32 %v258, %v607
      %v609 = vpop.f32.mrf.mxu0
      %610 = vmatprep.mubr.bf16.mxu0 0
      %611 = vmatmul.mubr.bf16.gmra.mxu0 %v469
      %v612 = vpop.f32.mrf.mxu0
      %v613 = vadd.f32 %v258, %v612
      %v614 = vpop.f32.mrf.mxu0
      %v615 = vpop.f32.mrf.mxu0
      %v616 = vadd.f32 %v258, %v615
      %v617 = vpop.f32.mrf.mxu0
      %618 = vmatprep.mubr.bf16.mxu0 0
      %619 = vmatmul.mubr.bf16.gmra.mxu0 %v472
      %v620 = vpop.f32.mrf.mxu0
      %v621 = vadd.f32 %v258, %v620
      %v622 = vpop.f32.mrf.mxu0
      %v623 = vpop.f32.mrf.mxu0
      %v624 = vadd.f32 %v258, %v623
      %v625 = vpop.f32.mrf.mxu0
      %626 = vmatprep.mubr.bf16.mxu0 0
      %627 = vmatmul.mubr.bf16.gmra.mxu0 %v475
      %v628 = vpop.f32.mrf.mxu0
      %v629 = vadd.f32 %v258, %v628
      %v630 = vpop.f32.mrf.mxu0
      %v631 = vpop.f32.mrf.mxu0
      %v632 = vadd.f32 %v258, %v631
      %v633 = vpop.f32.mrf.mxu0
      %634 = vmatprep.mubr.bf16.mxu0 0
      %635 = vmatmul.mubr.bf16.gmra.mxu0 %v478
      %v636 = vpop.f32.mrf.mxu0
      %v637 = vadd.f32 %v258, %v636
      %v638 = vpop.f32.mrf.mxu0
      %v639 = vpop.f32.mrf.mxu0
      %v640 = vadd.f32 %v258, %v639
      %v641 = vpop.f32.mrf.mxu0
      %642 = vmatprep.mubr.bf16.mxu0 0
      %643 = vmatmul.mubr.bf16.gmra.mxu0 %v481
      %v644 = vpop.f32.mrf.mxu0
      %v645 = vadd.f32 %v258, %v644
      %v646 = vpop.f32.mrf.mxu0
      %v647 = vpop.f32.mrf.mxu0
      %v648 = vadd.f32 %v258, %v647
      %v649 = vpop.f32.mrf.mxu0
      %650 = vmatprep.mubr.bf16.mxu0 0
      %651 = vmatmul.mubr.bf16.gmra.mxu0 %v484
      %v652 = vpop.f32.mrf.mxu0
      %v653 = vadd.f32 %v258, %v652
      %v654 = vpop.f32.mrf.mxu0
      %v655 = vpop.f32.mrf.mxu0
      %v656 = vadd.f32 %v258, %v655
      %v657 = vpop.f32.mrf.mxu0
      %658 = vmatprep.mubr.bf16.mxu0 0
      %659 = vmatmul.mubr.bf16.gmra.mxu0 %v487
      %v660 = vpop.f32.mrf.mxu0
      %v661 = vadd.f32 %v258, %v660
      %v662 = vpop.f32.mrf.mxu0
      %v663 = vpop.f32.mrf.mxu0
      %v664 = vadd.f32 %v258, %v663
      %v665 = vpop.f32.mrf.mxu0
      %666 = vmatprep.mubr.bf16.mxu0 0
      %667 = vmatmul.mubr.bf16.gmra.mxu0 %v490
      %v668 = vpop.f32.mrf.mxu0
      %v669 = vadd.f32 %v258, %v668
      %v670 = vpop.f32.mrf.mxu0
      %v671 = vpop.f32.mrf.mxu0
      %v672 = vadd.f32 %v258, %v671
      %v673 = vpop.f32.mrf.mxu0
      %674 = vmatprep.mubr.bf16.mxu0 0
      %675 = vmatmul.mubr.bf16.gmra.mxu0 %v493
      %v676 = vpop.f32.mrf.mxu0
      %v677 = vadd.f32 %v258, %v676
      %v678 = vpop.f32.mrf.mxu0
      %v679 = vpop.f32.mrf.mxu0
      %v680 = vadd.f32 %v258, %v679
      %v681 = vpop.f32.mrf.mxu0
      %682 = vmatprep.mubr.bf16.mxu0 0
      %683 = vmatmul.mubr.bf16.gmra.mxu0 %v496
      %v684 = vpop.f32.mrf.mxu0
      %v685 = vadd.f32 %v258, %v684
      %v686 = vpop.f32.mrf.mxu0
      %v687 = vpop.f32.mrf.mxu0
      %v688 = vadd.f32 %v258, %v687
      %v689 = vpop.f32.mrf.mxu0
      %690 = vmatprep.mubr.bf16.mxu0 0
      %691 = vmatmul.mubr.bf16.gmra.mxu0 %v499
      %v692 = vpop.f32.mrf.mxu0
      %v693 = vadd.f32 %v258, %v692
      %v694 = vpop.f32.mrf.mxu0
      %v695 = vpop.f32.mrf.mxu0
      %v696 = vadd.f32 %v258, %v695
      %v697 = vpop.f32.mrf.mxu0
      %698 = vmatprep.mubr.bf16.mxu0 0
      %699 = vmatmul.mubr.bf16.gmra.mxu0 %v502
      %v700 = vpop.f32.mrf.mxu0
      %v701 = vadd.f32 %v258, %v700
      %v702 = vpop.f32.mrf.mxu0
      %v703 = vpop.f32.mrf.mxu0
      %v704 = vadd.f32 %v258, %v703
      %v705 = vpop.f32.mrf.mxu0
      %706 = vmatprep.mubr.bf16.mxu0 0
      %707 = vmatmul.mubr.bf16.gmra.mxu0 %v505
      %v708 = vpop.f32.mrf.mxu0
      %v709 = vadd.f32 %v258, %v708
      %v710 = vpop.f32.mrf.mxu0
      %v711 = vpop.f32.mrf.mxu0
      %v712 = vadd.f32 %v258, %v711
      %v713 = vpop.f32.mrf.mxu0
      %714 = vmatprep.mubr.bf16.mxu0 0
      %715 = vmatmul.mubr.bf16.gmra.mxu0 %v508
      %v716 = vpop.f32.mrf.mxu0
      %v717 = vadd.f32 %v258, %v716
      %v718 = vpop.f32.mrf.mxu0
      %v719 = vpop.f32.mrf.mxu0
      %v720 = vadd.f32 %v258, %v719
      %v721 = vpop.f32.mrf.mxu0
      %722 = vmatprep.mubr.bf16.mxu0 0
      %723 = vmatmul.mubr.bf16.gmra.mxu0 %v511
      %v724 = vpop.f32.mrf.mxu0
      %v725 = vadd.f32 %v258, %v724
      %v726 = vpop.f32.mrf.mxu0
      %v727 = vpop.f32.mrf.mxu0
      %v728 = vadd.f32 %v258, %v727
      %v729 = vpop.f32.mrf.mxu0
      %730 = vmatprep.mubr.bf16.mxu0 0
      %731 = vmatmul.mubr.bf16.gmra.mxu0 %v514
      %v732 = vpop.f32.mrf.mxu0
      %v733 = vadd.f32 %v258, %v732
      %v734 = vpop.f32.mrf.mxu0
      %v735 = vpop.f32.mrf.mxu0
      %v736 = vadd.f32 %v258, %v735
      %v737 = vpop.f32.mrf.mxu0
      %738 = vmatprep.mubr.bf16.mxu0 0
      %739 = vmatmul.mubr.bf16.gmra.mxu0 %v517
      %v740 = vpop.f32.mrf.mxu0
      %v741 = vadd.f32 %v258, %v740
      %v742 = vpop.f32.mrf.mxu0
      %v743 = vpop.f32.mrf.mxu0
      %v744 = vadd.f32 %v258, %v743
      %v745 = vpop.f32.mrf.mxu0
      %746 = vmatprep.mubr.bf16.mxu0 0
      %747 = vmatmul.mubr.bf16.gmra.mxu0 %v520
      %v748 = vpop.f32.mrf.mxu0
      %v749 = vadd.f32 %v258, %v748
      %v750 = vpop.f32.mrf.mxu0
      %v751 = vpop.f32.mrf.mxu0
      %v752 = vadd.f32 %v258, %v751
      %v753 = vpop.f32.mrf.mxu0
      %754 = vmatprep.mubr.bf16.mxu0 0
      %755 = vmatmul.mubr.bf16.gmra.mxu0 %v523
      %v756 = vpop.f32.mrf.mxu0
      %v757 = vadd.f32 %v258, %v756
      %v758 = vpop.f32.mrf.mxu0
      %v759 = vpop.f32.mrf.mxu0
      %v760 = vadd.f32 %v258, %v759
      %v761 = vpop.f32.mrf.mxu0
      %762 = vmatprep.mubr.bf16.mxu0 0
      %763 = vmatmul.mubr.bf16.gmra.mxu0 %v526
      %v764 = vpop.f32.mrf.mxu0
      %v765 = vadd.f32 %v258, %v764
      %v766 = vpop.f32.mrf.mxu0
      %v767 = vpop.f32.mrf.mxu0
      %v768 = vadd.f32 %v258, %v767
      %v769 = vpop.f32.mrf.mxu0
      %770 = vmatprep.mubr.bf16.mxu0 0
      %771 = vmatmul.mubr.bf16.gmra.mxu0 %v529
      %v772 = vpop.f32.mrf.mxu0
      %v773 = vadd.f32 %v258, %v772
      %v774 = vpop.f32.mrf.mxu0
      %v775 = vpop.f32.mrf.mxu0
      %v776 = vadd.f32 %v258, %v775
      %v777 = vpop.f32.mrf.mxu0
      %778 = vmatprep.mubr.bf16.mxu0 0
      %779 = vmatmul.mubr.bf16.gmra.mxu0 %v532
      %v780 = vpop.f32.mrf.mxu0
      %v781 = vadd.f32 %v258, %v780
      %v782 = vpop.f32.mrf.mxu0
      %v783 = vpop.f32.mrf.mxu0
      %v784 = vadd.f32 %v258, %v783
      %v785 = vpop.f32.mrf.mxu0
      %786 = vmatprep.mubr.bf16.mxu0 0
      %787 = vmatmul.mubr.bf16.gmra.mxu0 %v535
      %v788 = vpop.f32.mrf.mxu0
      %v789 = vadd.f32 %v258, %v788
      %v790 = vpop.f32.mrf.mxu0
      %v791 = vpop.f32.mrf.mxu0
      %v792 = vadd.f32 %v258, %v791
      %v793 = vpop.f32.mrf.mxu0
      %794 = vmatprep.mubr.bf16.mxu0 0
      %795 = vmatmul.mubr.bf16.gmra.mxu0 %v538
      %v796 = vpop.f32.mrf.mxu0
      %v797 = vadd.f32 %v258, %v796
      %v798 = vpop.f32.mrf.mxu0
      %v799 = vpop.f32.mrf.mxu0
      %v800 = vadd.f32 %v258, %v799
      %v801 = vpop.f32.mrf.mxu0
      %802 = vmatprep.mubr.bf16.mxu0 0
      %803 = vmatmul.mubr.bf16.gmra.mxu0 %v541
      %v804 = vpop.f32.mrf.mxu0
      %v805 = vadd.f32 %v258, %v804
      %v806 = vpop.f32.mrf.mxu0
      %v807 = vpop.f32.mrf.mxu0
      %v808 = vadd.f32 %v258, %v807
      %v809 = vpop.f32.mrf.mxu0
      %810 = vmatprep.mubr.bf16.mxu0 0
      %811 = vmatmul.mubr.bf16.gmra.mxu0 %v544
      %v812 = vpop.f32.mrf.mxu0
      %v813 = vadd.f32 %v258, %v812
      %v814 = vpop.f32.mrf.mxu0
      %v815 = vpop.f32.mrf.mxu0
      %v816 = vadd.f32 %v258, %v815
      %v817 = vpop.f32.mrf.mxu0
      %818 = vmatprep.mubr.bf16.mxu0 0
      %819 = vmatmul.mubr.bf16.gmra.mxu0 %v547
      %v820 = vpop.f32.mrf.mxu0
      %v821 = vadd.f32 %v258, %v820
      %v822 = vpop.f32.mrf.mxu0
      %v823 = vpop.f32.mrf.mxu0
      %v824 = vadd.f32 %v258, %v823
      %v825 = vpop.f32.mrf.mxu0
      %826 = vmatprep.mubr.bf16.mxu0 0
      %827 = vmatmul.mubr.bf16.gmra.mxu0 %v550
      %v828 = vpop.f32.mrf.mxu0
      %v829 = vadd.f32 %v258, %v828
      %v830 = vpop.f32.mrf.mxu0
      %v831 = vpop.f32.mrf.mxu0
      %v832 = vadd.f32 %v258, %v831
      %v833 = vpop.f32.mrf.mxu0
      %834 = vmatprep.mubr.bf16.mxu0 0
      %835 = vmatmul.mubr.bf16.gmra.mxu0 %v553
      %v836 = vpop.f32.mrf.mxu0
      %v837 = vadd.f32 %v258, %v836
      %v838 = vpop.f32.mrf.mxu0
      %v839 = vpop.f32.mrf.mxu0
      %v840 = vadd.f32 %v258, %v839
      %v841 = vpop.f32.mrf.mxu0
      %842 = vmatprep.mubr.bf16.mxu0 0
      %843 = vmatmul.mubr.bf16.gmra.mxu0 %v556
      %v844 = vpop.f32.mrf.mxu0
      %v845 = vadd.f32 %v258, %v844
      %v846 = vpop.f32.mrf.mxu0
      %v847 = vpop.f32.mrf.mxu0
      %v848 = vadd.f32 %v258, %v847
      %v849 = vpop.f32.mrf.mxu0
      %850 = vdwg.mxu0
      %v851 = vmax.f32 %v597, 0.0
      %v852 = vmax.f32 %v600, 0.0
      %v853 = vmax.f32 %v605, 0.0
      %v854 = vmax.f32 %v608, 0.0
      %v855 = vmax.f32 %v613, 0.0
      %v856 = vmax.f32 %v616, 0.0
      %v857 = vmax.f32 %v621, 0.0
      %v858 = vmax.f32 %v624, 0.0
      %v859 = vmax.f32 %v629, 0.0
      %v860 = vmax.f32 %v632, 0.0
      %v861 = vmax.f32 %v637, 0.0
      %v862 = vmax.f32 %v640, 0.0
      %v863 = vmax.f32 %v645, 0.0
      %v864 = vmax.f32 %v648, 0.0
      %v865 = vmax.f32 %v653, 0.0
      %v866 = vmax.f32 %v656, 0.0
      %v867 = vmax.f32 %v661, 0.0
      %v868 = vmax.f32 %v664, 0.0
      %v869 = vmax.f32 %v669, 0.0
      %v870 = vmax.f32 %v672, 0.0
      %v871 = vmax.f32 %v677, 0.0
      %v872 = vmax.f32 %v680, 0.0
      %v873 = vmax.f32 %v685, 0.0
      %v874 = vmax.f32 %v688, 0.0
      %v875 = vmax.f32 %v693, 0.0
      %v876 = vmax.f32 %v696, 0.0
      %v877 = vmax.f32 %v701, 0.0
      %v878 = vmax.f32 %v704, 0.0
      %v879 = vmax.f32 %v709, 0.0
      %v880 = vmax.f32 %v712, 0.0
      %v881 = vmax.f32 %v717, 0.0
      %v882 = vmax.f32 %v720, 0.0
      %v883 = vmax.f32 %v725, 0.0
      %v884 = vmax.f32 %v728, 0.0
      %v885 = vmax.f32 %v733, 0.0
      %v886 = vmax.f32 %v736, 0.0
      %v887 = vmax.f32 %v741, 0.0
      %v888 = vmax.f32 %v744, 0.0
      %v889 = vmax.f32 %v749, 0.0
      %v890 = vmax.f32 %v752, 0.0
      %v891 = vmax.f32 %v757, 0.0
      %v892 = vmax.f32 %v760, 0.0
      %v893 = vmax.f32 %v765, 0.0
      %v894 = vmax.f32 %v768, 0.0
      %v895 = vmax.f32 %v773, 0.0
      %v896 = vmax.f32 %v776, 0.0
      %v897 = vmax.f32 %v781, 0.0
      %v898 = vmax.f32 %v784, 0.0
      %v899 = vmax.f32 %v789, 0.0
      %v900 = vmax.f32 %v792, 0.0
      %v901 = vmax.f32 %v797, 0.0
      %v902 = vmax.f32 %v800, 0.0
      %v903 = vmax.f32 %v805, 0.0
      %v904 = vmax.f32 %v808, 0.0
      %v905 = vmax.f32 %v813, 0.0
      %v906 = vmax.f32 %v816, 0.0
      %v907 = vmax.f32 %v821, 0.0
      %v908 = vmax.f32 %v824, 0.0
      %v909 = vmax.f32 %v829, 0.0
      %v910 = vmax.f32 %v832, 0.0
      %v911 = vmax.f32 %v837, 0.0
      %v912 = vmax.f32 %v840, 0.0
      %v913 = vmax.f32 %v845, 0.0
      %v914 = vmax.f32 %v848, 0.0
      %v915 = vrot.slane %v851, 4
      %v916 = vmax.f32 %v851, %v915
      %v917 = vrot.slane %v916, 2
      %v918 = vmax.f32 %v916, %v917
      %v919 = vrot.slane %v918, 1
      %v920 = vmax.f32 %v918, %v919
      %v921 = vrot.slane %v852, 4
      %v922 = vmax.f32 %v852, %v921
      %v923 = vrot.slane %v922, 2
      %v924 = vmax.f32 %v922, %v923
      %v925 = vrot.slane %v924, 1
      %v926 = vmax.f32 %v924, %v925
      %v927 = vrot.slane %v853, 4
      %v928 = vmax.f32 %v853, %v927
      %v929 = vrot.slane %v928, 2
      %v930 = vmax.f32 %v928, %v929
      %v931 = vrot.slane %v930, 1
      %v932 = vmax.f32 %v930, %v931
      %v933 = vrot.slane %v854, 4
      %v934 = vmax.f32 %v854, %v933
      %v935 = vrot.slane %v934, 2
      %v936 = vmax.f32 %v934, %v935
      %v937 = vrot.slane %v936, 1
      %v938 = vmax.f32 %v936, %v937
      %v939 = vrot.slane %v855, 4
      %v940 = vmax.f32 %v855, %v939
      %v941 = vrot.slane %v940, 2
      %v942 = vmax.f32 %v940, %v941
      %v943 = vrot.slane %v942, 1
      %v944 = vmax.f32 %v942, %v943
      %v945 = vrot.slane %v856, 4
      %v946 = vmax.f32 %v856, %v945
      %v947 = vrot.slane %v946, 2
      %v948 = vmax.f32 %v946, %v947
      %v949 = vrot.slane %v948, 1
      %v950 = vmax.f32 %v948, %v949
      %v951 = vrot.slane %v857, 4
      %v952 = vmax.f32 %v857, %v951
      %v953 = vrot.slane %v952, 2
      %v954 = vmax.f32 %v952, %v953
      %v955 = vrot.slane %v954, 1
      %v956 = vmax.f32 %v954, %v955
      %v957 = vrot.slane %v858, 4
      %v958 = vmax.f32 %v858, %v957
      %v959 = vrot.slane %v958, 2
      %v960 = vmax.f32 %v958, %v959
      %v961 = vrot.slane %v960, 1
      %v962 = vmax.f32 %v960, %v961
      %v963 = vrot.slane %v859, 4
      %v964 = vmax.f32 %v859, %v963
      %v965 = vrot.slane %v964, 2
      %v966 = vmax.f32 %v964, %v965
      %v967 = vrot.slane %v966, 1
      %v968 = vmax.f32 %v966, %v967
      %v969 = vrot.slane %v860, 4
      %v970 = vmax.f32 %v860, %v969
      %v971 = vrot.slane %v970, 2
      %v972 = vmax.f32 %v970, %v971
      %v973 = vrot.slane %v972, 1
      %v974 = vmax.f32 %v972, %v973
      %v975 = vrot.slane %v861, 4
      %v976 = vmax.f32 %v861, %v975
      %v977 = vrot.slane %v976, 2
      %v978 = vmax.f32 %v976, %v977
      %v979 = vrot.slane %v978, 1
      %v980 = vmax.f32 %v978, %v979
      %v981 = vrot.slane %v862, 4
      %v982 = vmax.f32 %v862, %v981
      %v983 = vrot.slane %v982, 2
      %v984 = vmax.f32 %v982, %v983
      %v985 = vrot.slane %v984, 1
      %v986 = vmax.f32 %v984, %v985
      %v987 = vrot.slane %v863, 4
      %v988 = vmax.f32 %v863, %v987
      %v989 = vrot.slane %v988, 2
      %v990 = vmax.f32 %v988, %v989
      %v991 = vrot.slane %v990, 1
      %v992 = vmax.f32 %v990, %v991
      %v993 = vrot.slane %v864, 4
      %v994 = vmax.f32 %v864, %v993
      %v995 = vrot.slane %v994, 2
      %v996 = vmax.f32 %v994, %v995
      %v997 = vrot.slane %v996, 1
      %v998 = vmax.f32 %v996, %v997
      %v999 = vrot.slane %v865, 4
      %v1000 = vmax.f32 %v865, %v999
      %v1001 = vrot.slane %v1000, 2
      %v1002 = vmax.f32 %v1000, %v1001
      %v1003 = vrot.slane %v1002, 1
      %v1004 = vmax.f32 %v1002, %v1003
      %v1005 = vrot.slane %v866, 4
      %v1006 = vmax.f32 %v866, %v1005
      %v1007 = vrot.slane %v1006, 2
      %v1008 = vmax.f32 %v1006, %v1007
      %v1009 = vrot.slane %v1008, 1
      %v1010 = vmax.f32 %v1008, %v1009
      %v1011 = vrot.slane %v867, 4
      %v1012 = vmax.f32 %v867, %v1011
      %v1013 = vrot.slane %v1012, 2
      %v1014 = vmax.f32 %v1012, %v1013
      %v1015 = vrot.slane %v1014, 1
      %v1016 = vmax.f32 %v1014, %v1015
      %v1017 = vrot.slane %v868, 4
      %v1018 = vmax.f32 %v868, %v1017
      %v1019 = vrot.slane %v1018, 2
      %v1020 = vmax.f32 %v1018, %v1019
      %v1021 = vrot.slane %v1020, 1
      %v1022 = vmax.f32 %v1020, %v1021
      %v1023 = vrot.slane %v869, 4
      %v1024 = vmax.f32 %v869, %v1023
      %v1025 = vrot.slane %v1024, 2
      %v1026 = vmax.f32 %v1024, %v1025
      %v1027 = vrot.slane %v1026, 1
      %v1028 = vmax.f32 %v1026, %v1027
      %v1029 = vrot.slane %v870, 4
      %v1030 = vmax.f32 %v870, %v1029
      %v1031 = vrot.slane %v1030, 2
      %v1032 = vmax.f32 %v1030, %v1031
      %v1033 = vrot.slane %v1032, 1
      %v1034 = vmax.f32 %v1032, %v1033
      %v1035 = vrot.slane %v871, 4
      %v1036 = vmax.f32 %v871, %v1035
      %v1037 = vrot.slane %v1036, 2
      %v1038 = vmax.f32 %v1036, %v1037
      %v1039 = vrot.slane %v1038, 1
      %v1040 = vmax.f32 %v1038, %v1039
      %v1041 = vrot.slane %v872, 4
      %v1042 = vmax.f32 %v872, %v1041
      %v1043 = vrot.slane %v1042, 2
      %v1044 = vmax.f32 %v1042, %v1043
      %v1045 = vrot.slane %v1044, 1
      %v1046 = vmax.f32 %v1044, %v1045
      %v1047 = vrot.slane %v873, 4
      %v1048 = vmax.f32 %v873, %v1047
      %v1049 = vrot.slane %v1048, 2
      %v1050 = vmax.f32 %v1048, %v1049
      %v1051 = vrot.slane %v1050, 1
      %v1052 = vmax.f32 %v1050, %v1051
      %v1053 = vrot.slane %v874, 4
      %v1054 = vmax.f32 %v874, %v1053
      %v1055 = vrot.slane %v1054, 2
      %v1056 = vmax.f32 %v1054, %v1055
      %v1057 = vrot.slane %v1056, 1
      %v1058 = vmax.f32 %v1056, %v1057
      %v1059 = vrot.slane %v875, 4
      %v1060 = vmax.f32 %v875, %v1059
      %v1061 = vrot.slane %v1060, 2
      %v1062 = vmax.f32 %v1060, %v1061
      %v1063 = vrot.slane %v1062, 1
      %v1064 = vmax.f32 %v1062, %v1063
      %v1065 = vrot.slane %v876, 4
      %v1066 = vmax.f32 %v876, %v1065
      %v1067 = vrot.slane %v1066, 2
      %v1068 = vmax.f32 %v1066, %v1067
      %v1069 = vrot.slane %v1068, 1
      %v1070 = vmax.f32 %v1068, %v1069
      %v1071 = vrot.slane %v877, 4
      %v1072 = vmax.f32 %v877, %v1071
      %v1073 = vrot.slane %v1072, 2
      %v1074 = vmax.f32 %v1072, %v1073
      %v1075 = vrot.slane %v1074, 1
      %v1076 = vmax.f32 %v1074, %v1075
      %v1077 = vrot.slane %v878, 4
      %v1078 = vmax.f32 %v878, %v1077
      %v1079 = vrot.slane %v1078, 2
      %v1080 = vmax.f32 %v1078, %v1079
      %v1081 = vrot.slane %v1080, 1
      %v1082 = vmax.f32 %v1080, %v1081
      %v1083 = vrot.slane %v879, 4
      %v1084 = vmax.f32 %v879, %v1083
      %v1085 = vrot.slane %v1084, 2
      %v1086 = vmax.f32 %v1084, %v1085
      %v1087 = vrot.slane %v1086, 1
      %v1088 = vmax.f32 %v1086, %v1087
      %v1089 = vrot.slane %v880, 4
      %v1090 = vmax.f32 %v880, %v1089
      %v1091 = vrot.slane %v1090, 2
      %v1092 = vmax.f32 %v1090, %v1091
      %v1093 = vrot.slane %v1092, 1
      %v1094 = vmax.f32 %v1092, %v1093
      %v1095 = vrot.slane %v881, 4
      %v1096 = vmax.f32 %v881, %v1095
      %v1097 = vrot.slane %v1096, 2
      %v1098 = vmax.f32 %v1096, %v1097
      %v1099 = vrot.slane %v1098, 1
      %v1100 = vmax.f32 %v1098, %v1099
      %v1101 = vrot.slane %v882, 4
      %v1102 = vmax.f32 %v882, %v1101
      %v1103 = vrot.slane %v1102, 2
      %v1104 = vmax.f32 %v1102, %v1103
      %v1105 = vrot.slane %v1104, 1
      %v1106 = vmax.f32 %v1104, %v1105
      %v1107 = vrot.slane %v883, 4
      %v1108 = vmax.f32 %v883, %v1107
      %v1109 = vrot.slane %v1108, 2
      %v1110 = vmax.f32 %v1108, %v1109
      %v1111 = vrot.slane %v1110, 1
      %v1112 = vmax.f32 %v1110, %v1111
      %v1113 = vrot.slane %v884, 4
      %v1114 = vmax.f32 %v884, %v1113
      %v1115 = vrot.slane %v1114, 2
      %v1116 = vmax.f32 %v1114, %v1115
      %v1117 = vrot.slane %v1116, 1
      %v1118 = vmax.f32 %v1116, %v1117
      %v1119 = vrot.slane %v885, 4
      %v1120 = vmax.f32 %v885, %v1119
      %v1121 = vrot.slane %v1120, 2
      %v1122 = vmax.f32 %v1120, %v1121
      %v1123 = vrot.slane %v1122, 1
      %v1124 = vmax.f32 %v1122, %v1123
      %v1125 = vrot.slane %v886, 4
      %v1126 = vmax.f32 %v886, %v1125
      %v1127 = vrot.slane %v1126, 2
      %v1128 = vmax.f32 %v1126, %v1127
      %v1129 = vrot.slane %v1128, 1
      %v1130 = vmax.f32 %v1128, %v1129
      %v1131 = vrot.slane %v887, 4
      %v1132 = vmax.f32 %v887, %v1131
      %v1133 = vrot.slane %v1132, 2
      %v1134 = vmax.f32 %v1132, %v1133
      %v1135 = vrot.slane %v1134, 1
      %v1136 = vmax.f32 %v1134, %v1135
      %v1137 = vrot.slane %v888, 4
      %v1138 = vmax.f32 %v888, %v1137
      %v1139 = vrot.slane %v1138, 2
      %v1140 = vmax.f32 %v1138, %v1139
      %v1141 = vrot.slane %v1140, 1
      %v1142 = vmax.f32 %v1140, %v1141
      %v1143 = vrot.slane %v889, 4
      %v1144 = vmax.f32 %v889, %v1143
      %v1145 = vrot.slane %v1144, 2
      %v1146 = vmax.f32 %v1144, %v1145
      %v1147 = vrot.slane %v1146, 1
      %v1148 = vmax.f32 %v1146, %v1147
      %v1149 = vrot.slane %v890, 4
      %v1150 = vmax.f32 %v890, %v1149
      %v1151 = vrot.slane %v1150, 2
      %v1152 = vmax.f32 %v1150, %v1151
      %v1153 = vrot.slane %v1152, 1
      %v1154 = vmax.f32 %v1152, %v1153
      %v1155 = vrot.slane %v891, 4
      %v1156 = vmax.f32 %v891, %v1155
      %v1157 = vrot.slane %v1156, 2
      %v1158 = vmax.f32 %v1156, %v1157
      %v1159 = vrot.slane %v1158, 1
      %v1160 = vmax.f32 %v1158, %v1159
      %v1161 = vrot.slane %v892, 4
      %v1162 = vmax.f32 %v892, %v1161
      %v1163 = vrot.slane %v1162, 2
      %v1164 = vmax.f32 %v1162, %v1163
      %v1165 = vrot.slane %v1164, 1
      %v1166 = vmax.f32 %v1164, %v1165
      %v1167 = vrot.slane %v893, 4
      %v1168 = vmax.f32 %v893, %v1167
      %v1169 = vrot.slane %v1168, 2
      %v1170 = vmax.f32 %v1168, %v1169
      %v1171 = vrot.slane %v1170, 1
      %v1172 = vmax.f32 %v1170, %v1171
      %v1173 = vrot.slane %v894, 4
      %v1174 = vmax.f32 %v894, %v1173
      %v1175 = vrot.slane %v1174, 2
      %v1176 = vmax.f32 %v1174, %v1175
      %v1177 = vrot.slane %v1176, 1
      %v1178 = vmax.f32 %v1176, %v1177
      %v1179 = vrot.slane %v895, 4
      %v1180 = vmax.f32 %v895, %v1179
      %v1181 = vrot.slane %v1180, 2
      %v1182 = vmax.f32 %v1180, %v1181
      %v1183 = vrot.slane %v1182, 1
      %v1184 = vmax.f32 %v1182, %v1183
      %v1185 = vrot.slane %v896, 4
      %v1186 = vmax.f32 %v896, %v1185
      %v1187 = vrot.slane %v1186, 2
      %v1188 = vmax.f32 %v1186, %v1187
      %v1189 = vrot.slane %v1188, 1
      %v1190 = vmax.f32 %v1188, %v1189
      %v1191 = vrot.slane %v897, 4
      %v1192 = vmax.f32 %v897, %v1191
      %v1193 = vrot.slane %v1192, 2
      %v1194 = vmax.f32 %v1192, %v1193
      %v1195 = vrot.slane %v1194, 1
      %v1196 = vmax.f32 %v1194, %v1195
      %v1197 = vrot.slane %v898, 4
      %v1198 = vmax.f32 %v898, %v1197
      %v1199 = vrot.slane %v1198, 2
      %v1200 = vmax.f32 %v1198, %v1199
      %v1201 = vrot.slane %v1200, 1
      %v1202 = vmax.f32 %v1200, %v1201
      %v1203 = vrot.slane %v899, 4
      %v1204 = vmax.f32 %v899, %v1203
      %v1205 = vrot.slane %v1204, 2
      %v1206 = vmax.f32 %v1204, %v1205
      %v1207 = vrot.slane %v1206, 1
      %v1208 = vmax.f32 %v1206, %v1207
      %v1209 = vrot.slane %v900, 4
      %v1210 = vmax.f32 %v900, %v1209
      %v1211 = vrot.slane %v1210, 2
      %v1212 = vmax.f32 %v1210, %v1211
      %v1213 = vrot.slane %v1212, 1
      %v1214 = vmax.f32 %v1212, %v1213
      %v1215 = vrot.slane %v901, 4
      %v1216 = vmax.f32 %v901, %v1215
      %v1217 = vrot.slane %v1216, 2
      %v1218 = vmax.f32 %v1216, %v1217
      %v1219 = vrot.slane %v1218, 1
      %v1220 = vmax.f32 %v1218, %v1219
      %v1221 = vrot.slane %v902, 4
      %v1222 = vmax.f32 %v902, %v1221
      %v1223 = vrot.slane %v1222, 2
      %v1224 = vmax.f32 %v1222, %v1223
      %v1225 = vrot.slane %v1224, 1
      %v1226 = vmax.f32 %v1224, %v1225
      %v1227 = vrot.slane %v903, 4
      %v1228 = vmax.f32 %v903, %v1227
      %v1229 = vrot.slane %v1228, 2
      %v1230 = vmax.f32 %v1228, %v1229
      %v1231 = vrot.slane %v1230, 1
      %v1232 = vmax.f32 %v1230, %v1231
      %v1233 = vrot.slane %v904, 4
      %v1234 = vmax.f32 %v904, %v1233
      %v1235 = vrot.slane %v1234, 2
      %v1236 = vmax.f32 %v1234, %v1235
      %v1237 = vrot.slane %v1236, 1
      %v1238 = vmax.f32 %v1236, %v1237
      %v1239 = vrot.slane %v905, 4
      %v1240 = vmax.f32 %v905, %v1239
      %v1241 = vrot.slane %v1240, 2
      %v1242 = vmax.f32 %v1240, %v1241
      %v1243 = vrot.slane %v1242, 1
      %v1244 = vmax.f32 %v1242, %v1243
      %v1245 = vrot.slane %v906, 4
      %v1246 = vmax.f32 %v906, %v1245
      %v1247 = vrot.slane %v1246, 2
      %v1248 = vmax.f32 %v1246, %v1247
      %v1249 = vrot.slane %v1248, 1
      %v1250 = vmax.f32 %v1248, %v1249
      %v1251 = vrot.slane %v907, 4
      %v1252 = vmax.f32 %v907, %v1251
      %v1253 = vrot.slane %v1252, 2
      %v1254 = vmax.f32 %v1252, %v1253
      %v1255 = vrot.slane %v1254, 1
      %v1256 = vmax.f32 %v1254, %v1255
      %v1257 = vrot.slane %v908, 4
      %v1258 = vmax.f32 %v908, %v1257
      %v1259 = vrot.slane %v1258, 2
      %v1260 = vmax.f32 %v1258, %v1259
      %v1261 = vrot.slane %v1260, 1
      %v1262 = vmax.f32 %v1260, %v1261
      %v1263 = vrot.slane %v909, 4
      %v1264 = vmax.f32 %v909, %v1263
      %v1265 = vrot.slane %v1264, 2
      %v1266 = vmax.f32 %v1264, %v1265
      %v1267 = vrot.slane %v1266, 1
      %v1268 = vmax.f32 %v1266, %v1267
      %v1269 = vrot.slane %v910, 4
      %v1270 = vmax.f32 %v910, %v1269
      %v1271 = vrot.slane %v1270, 2
      %v1272 = vmax.f32 %v1270, %v1271
      %v1273 = vrot.slane %v1272, 1
      %v1274 = vmax.f32 %v1272, %v1273
      %v1275 = vrot.slane %v911, 4
      %v1276 = vmax.f32 %v911, %v1275
      %v1277 = vrot.slane %v1276, 2
      %v1278 = vmax.f32 %v1276, %v1277
      %v1279 = vrot.slane %v1278, 1
      %v1280 = vmax.f32 %v1278, %v1279
      %v1281 = vrot.slane %v912, 4
      %v1282 = vmax.f32 %v912, %v1281
      %v1283 = vrot.slane %v1282, 2
      %v1284 = vmax.f32 %v1282, %v1283
      %v1285 = vrot.slane %v1284, 1
      %v1286 = vmax.f32 %v1284, %v1285
      %v1287 = vrot.slane %v913, 4
      %v1288 = vmax.f32 %v913, %v1287
      %v1289 = vrot.slane %v1288, 2
      %v1290 = vmax.f32 %v1288, %v1289
      %v1291 = vrot.slane %v1290, 1
      %v1292 = vmax.f32 %v1290, %v1291
      %v1293 = vrot.slane %v914, 4
      %v1294 = vmax.f32 %v914, %v1293
      %v1295 = vrot.slane %v1294, 2
      %v1296 = vmax.f32 %v1294, %v1295
      %v1297 = vrot.slane %v1296, 1
      %v1298 = vmax.f32 %v1296, %v1297
      %vm1363 = vcmask 1041409
      %v1364 = vsel %vm1363, %v926, %v920
      %vm1365 = vcmask 1042434
      %v1366 = vsel %vm1365, %v932, %v1364
      %vm1367 = vcmask 1043459
      %v1368 = vsel %vm1367, %v938, %v1366
      %vm1369 = vcmask 1044484
      %v1370 = vsel %vm1369, %v944, %v1368
      %vm1371 = vcmask 1045509
      %v1372 = vsel %vm1371, %v950, %v1370
      %vm1373 = vcmask 1046534
      %v1374 = vsel %vm1373, %v956, %v1372
      %vm1375 = vcmask 1047559
      %v1376 = vsel %vm1375, %v962, %v1374
      %v1377 = vsel %vm1363, %v974, %v968
      %v1378 = vsel %vm1365, %v980, %v1377
      %v1379 = vsel %vm1367, %v986, %v1378
      %v1380 = vsel %vm1369, %v992, %v1379
      %v1381 = vsel %vm1371, %v998, %v1380
      %v1382 = vsel %vm1373, %v1004, %v1381
      %v1383 = vsel %vm1375, %v1010, %v1382
      %v1384 = vsel %vm1363, %v1022, %v1016
      %v1385 = vsel %vm1365, %v1028, %v1384
      %v1386 = vsel %vm1367, %v1034, %v1385
      %v1387 = vsel %vm1369, %v1040, %v1386
      %v1388 = vsel %vm1371, %v1046, %v1387
      %v1389 = vsel %vm1373, %v1052, %v1388
      %v1390 = vsel %vm1375, %v1058, %v1389
      %v1391 = vsel %vm1363, %v1070, %v1064
      %v1392 = vsel %vm1365, %v1076, %v1391
      %v1393 = vsel %vm1367, %v1082, %v1392
      %v1394 = vsel %vm1369, %v1088, %v1393
      %v1395 = vsel %vm1371, %v1094, %v1394
      %v1396 = vsel %vm1373, %v1100, %v1395
      %v1397 = vsel %vm1375, %v1106, %v1396
      %v1398 = vsel %vm1363, %v1118, %v1112
      %v1399 = vsel %vm1365, %v1124, %v1398
      %v1400 = vsel %vm1367, %v1130, %v1399
      %v1401 = vsel %vm1369, %v1136, %v1400
      %v1402 = vsel %vm1371, %v1142, %v1401
      %v1403 = vsel %vm1373, %v1148, %v1402
      %v1404 = vsel %vm1375, %v1154, %v1403
      %v1405 = vsel %vm1363, %v1166, %v1160
      %v1406 = vsel %vm1365, %v1172, %v1405
      %v1407 = vsel %vm1367, %v1178, %v1406
      %v1408 = vsel %vm1369, %v1184, %v1407
      %v1409 = vsel %vm1371, %v1190, %v1408
      %v1410 = vsel %vm1373, %v1196, %v1409
      %v1411 = vsel %vm1375, %v1202, %v1410
      %v1412 = vsel %vm1363, %v1214, %v1208
      %v1413 = vsel %vm1365, %v1220, %v1412
      %v1414 = vsel %vm1367, %v1226, %v1413
      %v1415 = vsel %vm1369, %v1232, %v1414
      %v1416 = vsel %vm1371, %v1238, %v1415
      %v1417 = vsel %vm1373, %v1244, %v1416
      %v1418 = vsel %vm1375, %v1250, %v1417
      %v1419 = vsel %vm1363, %v1262, %v1256
      %v1420 = vsel %vm1365, %v1268, %v1419
      %v1421 = vsel %vm1367, %v1274, %v1420
      %v1422 = vsel %vm1369, %v1280, %v1421
      %v1423 = vsel %vm1371, %v1286, %v1422
      %v1424 = vsel %vm1373, %v1292, %v1423
      %v1425 = vsel %vm1375, %v1298, %v1424
      %1434 = vst [vmem:[%s172] sm:$0xff] %v1376
      %1435 = vst [vmem:[%s172 + $0x8] sm:$0xff] %v1383
      %1436 = vst [vmem:[%s172 + $0x10] sm:$0xff] %v1390
      %1437 = vst [vmem:[%s172 + $0x18] sm:$0xff] %v1397
      %1438 = vst [vmem:[%s172 + $0x20] sm:$0xff] %v1404
      %1439 = vst [vmem:[%s172 + $0x28] sm:$0xff] %v1411
      %1440 = vst [vmem:[%s172 + $0x30] sm:$0xff] %v1418
      %1441 = vst [vmem:[%s172 + $0x38] sm:$0xff] %v1425
      %s1442 = smul.u32 8, %s14
      %p1443 = scmp.lt.s32.totalorder %s1442, 15
      %s1444 = scalar_select %p1443, %s1442, 15
      %s1445 = smul.addr %s1444, 8
      %s1446 = scalar_lea.vmem %s3, %s1445
      // Predicated region
      $region33: #{simple_conv3d_net.3} parent=31 // pred_check
        %p1447 = pneg %p100
      $region34: #{simple_conv3d_net.3} parent=31 // pred_check_branch
        %1449 = sbr.rel (%p1447) target = $region36
      $region35: #{simple_conv3d_net.3} parent=31 // pred_region
        %s1450 = smul.u32 8, %s14
      $region36: #{simple_conv3d_net.3} parent=31 // pred_fallthru
        _
    $region32: #{simple_conv3d_net.3} parent=5 // pred_fallthru
      _
    %p1451 = scmp.le.s32.totalorder 2, %s9
    // Predicated region
    $region37: #{simple_conv3d_net.3} parent=5 // pred_check
      %p1452 = pneg %p1451
    $region38: #{simple_conv3d_net.3} parent=5 // pred_check_branch
      %1454 = sbr.rel (%p1452) target = $region40
    $region39: #{simple_conv3d_net.3} parent=5 // pred_region
      %s1455 = ssub.s32 %s9, 2
      // Predicated region
      $region41: #{simple_conv3d_net.3} parent=39 // pred_check
        %p1456 = pneg %p106
      $region42: #{simple_conv3d_net.3} parent=39 // pred_check_branch
        %1458 = sbr.rel (%p1456) target = $region44
      $region43: #{simple_conv3d_net.3} parent=39 // pred_region
        %s1459 = smul.u32 8, %s15
        %p1460 = scmp.lt.s32.totalorder %s1459, 15
        %s1461 = scalar_select %p1460, %s1459, 15
        %s1462 = smul.addr %s1461, 8
        %s1463 = scalar_lea.vmem %s3, %s1462
      $region44: #{simple_conv3d_net.3} parent=39 // pred_fallthru
        _
    $region40: #{simple_conv3d_net.3} parent=5 // pred_fallthru
      _
  $region6: #{simple_conv3d_net.3} parent=0 // loop_footer
    %s13 = sadd.s32 1, %s9
  $region7: #{simple_conv3d_net.3} parent=0 // loop_footer_branch
    %8 = sbr.rel target = $region3
  $region8: #{simple_conv3d_net.3} parent=0 // loop_exit
    _

// kernel: simple_conv3d_net.4
$region0: #{simple_conv3d_net.4}
  #allocation0 [shape = 'u32[]', space=smem, size = 0x4, offset = 0x4, fixed_abs, tag = 'smem constant byte address 0x4 - core index']
  #allocation1 [shape = 'u32[144,128]{1,0:T(1,128)}', space=vmem, size = 0x12000, scoped, tag = 'internal scratch']
  %s0 = inlined_call_operand.vmem [shape: bf16[128,432], index: 0, kind: input, shape index: {}]
  %s1 = inlined_call_operand.vmem [shape: bf16[432,128], index: 1, kind: input, shape index: {}]
  %s2 = inlined_call_operand.vmem [shape: f32[1,128], index: 2, kind: input, shape index: {}]
  %s3 = inlined_call_operand.vmem [shape: f32[16,128], index: 3, kind: output, shape index: {}]
  %s4 = sld [smem:[#allocation0]]
  $region22: #{simple_conv3d_net.4} parent=0
    _
  %s6 = ssub.s32 1, %s4
  %s7 = scalar_select 0, %s6, %s4
  // Predicated region
  $region2: #{simple_conv3d_net.4} parent=0 // pred_check
    _
  $region3: #{simple_conv3d_net.4} parent=0 // pred_check_branch
    %9 = sbr.rel (0) target = $region5
  $region4: #{simple_conv3d_net.4} parent=0 // pred_region
    _
  $region5: #{simple_conv3d_net.4} parent=0 // pred_fallthru
    _
  // Predicated region
  $region6: #{simple_conv3d_net.4} parent=0 // pred_check
    _
  $region7: #{simple_conv3d_net.4} parent=0 // pred_check_branch
    %11 = sbr.rel (0) target = $region9
  $region8: #{simple_conv3d_net.4} parent=0 // pred_region
    _
  $region9: #{simple_conv3d_net.4} parent=0 // pred_fallthru
    _
  // Predicated region
  $region10: #{simple_conv3d_net.4} parent=0 // pred_check
    _
  $region11: #{simple_conv3d_net.4} parent=0 // pred_check_branch
    %13 = sbr.rel (0) target = $region13
  $region12: #{simple_conv3d_net.4} parent=0 // pred_region
    _
  $region13: #{simple_conv3d_net.4} parent=0 // pred_fallthru
    _
  %v15 = vld [vmem:[%s0] sm:$0xff]
  %v16 = vld [vmem:[%s0 + $0x8] sm:$0xff]
  %v17 = vld [vmem:[%s0 + $0x10] sm:$0xff]
  %v18 = vld [vmem:[%s0 + $0x18] sm:$0xff]
  %v19 = vld [vmem:[%s0 + $0x20] sm:$0xff]
  %v20 = vld [vmem:[%s0 + $0x28] sm:$0xff]
  %v21 = vld [vmem:[%s0 + $0x30] sm:$0xff]
  %v22 = vld [vmem:[%s0 + $0x38] sm:$0xff]
  %v23 = vld [vmem:[%s0 + $0x40] sm:$0xff]
  %v24 = vld [vmem:[%s0 + $0x48] sm:$0xff]
  %v25 = vld [vmem:[%s0 + $0x50] sm:$0xff]
  %v26 = vld [vmem:[%s0 + $0x58] sm:$0xff]
  %v27 = vld [vmem:[%s0 + $0x60] sm:$0xff]
  %v28 = vld [vmem:[%s0 + $0x68] sm:$0xff]
  %v29 = vld [vmem:[%s0 + $0x70] sm:$0xff]
  %v30 = vld [vmem:[%s0 + $0x78] sm:$0xff]
  %v31 = vld [vmem:[%s0 + $0x80] sm:$0xff]
  %v32 = vld [vmem:[%s0 + $0x88] sm:$0xff]
  %v33 = vld [vmem:[%s0 + $0x90] sm:$0xff]
  %v34 = vld [vmem:[%s0 + $0x98] sm:$0xff]
  %v35 = vld [vmem:[%s0 + $0xa0] sm:$0xff]
  %v36 = vld [vmem:[%s0 + $0xa8] sm:$0xff]
  %v37 = vld [vmem:[%s0 + $0xb0] sm:$0xff]
  %v38 = vld [vmem:[%s0 + $0xb8] sm:$0xff]
  %v39 = vld [vmem:[%s0 + $0xc0] sm:$0xff]
  %v40 = vld [vmem:[%s0 + $0xc8] sm:$0xff]
  %v41 = vld [vmem:[%s0 + $0xd0] sm:$0xff]
  %v42 = vld [vmem:[%s0 + $0xd8] sm:$0xff]
  %v43 = vld [vmem:[%s0 + $0xe0] sm:$0xff]
  %v44 = vld [vmem:[%s0 + $0xe8] sm:$0xff]
  %v45 = vld [vmem:[%s0 + $0xf0] sm:$0xff]
  %v46 = vld [vmem:[%s0 + $0xf8] sm:$0xff]
  %v47 = vld [vmem:[%s1] sm:$0xf]
  %v48 = vld [vmem:[%s1 + $0x4] sm:$0xf]
  %v49 = vld [vmem:[%s1 + $0x8] sm:$0xf]
  %v50 = vld [vmem:[%s1 + $0xc] sm:$0xf]
  %v51 = vld [vmem:[%s1 + $0x10] sm:$0xf]
  %v52 = vld [vmem:[%s1 + $0x14] sm:$0xf]
  %v53 = vld [vmem:[%s1 + $0x18] sm:$0xf]
  %v54 = vld [vmem:[%s1 + $0x1c] sm:$0xf]
  %v55 = vld [vmem:[%s1 + $0x20] sm:$0xf]
  %v56 = vld [vmem:[%s1 + $0x24] sm:$0xf]
  %v57 = vld [vmem:[%s1 + $0x28] sm:$0xf]
  %v58 = vld [vmem:[%s1 + $0x2c] sm:$0xf]
  %v59 = vld [vmem:[%s1 + $0x30] sm:$0xf]
  %v60 = vld [vmem:[%s1 + $0x34] sm:$0xf]
  %v61 = vld [vmem:[%s1 + $0x38] sm:$0xf]
  %v62 = vld [vmem:[%s1 + $0x3c] sm:$0xf]
  %v63 = vld [vmem:[%s1 + $0x40] sm:$0xf]
  %v64 = vld [vmem:[%s1 + $0x44] sm:$0xf]
  %v65 = vld [vmem:[%s1 + $0x48] sm:$0xf]
  %v66 = vld [vmem:[%s1 + $0x4c] sm:$0xf]
  %v67 = vld [vmem:[%s1 + $0x50] sm:$0xf]
  %v68 = vld [vmem:[%s1 + $0x54] sm:$0xf]
  %v69 = vld [vmem:[%s1 + $0x58] sm:$0xf]
  %v70 = vld [vmem:[%s1 + $0x5c] sm:$0xf]
  %v71 = vld [vmem:[%s1 + $0x60] sm:$0xf]
  %v72 = vld [vmem:[%s1 + $0x64] sm:$0xf]
  %v73 = vld [vmem:[%s1 + $0x68] sm:$0xf]
  %v74 = vld [vmem:[%s1 + $0x6c] sm:$0xf]
  %v75 = vld [vmem:[%s1 + $0x70] sm:$0xf]
  %v76 = vld [vmem:[%s1 + $0x74] sm:$0xf]
  %v77 = vld [vmem:[%s1 + $0x78] sm:$0xf]
  %v78 = vld [vmem:[%s1 + $0x7c] sm:$0xf]
  %v79 = vld [vmem:[%s1 + $0x80] sm:$0xf]
  %v80 = vld [vmem:[%s1 + $0x84] sm:$0xf]
  %v81 = vld [vmem:[%s1 + $0x88] sm:$0xf]
  %v82 = vld [vmem:[%s1 + $0x8c] sm:$0xf]
  %v83 = vld [vmem:[%s1 + $0x90] sm:$0xf]
  %v84 = vld [vmem:[%s1 + $0x94] sm:$0xf]
  %v85 = vld [vmem:[%s1 + $0x98] sm:$0xf]
  %v86 = vld [vmem:[%s1 + $0x9c] sm:$0xf]
  %v87 = vld [vmem:[%s1 + $0xa0] sm:$0xf]
  %v88 = vld [vmem:[%s1 + $0xa4] sm:$0xf]
  %v89 = vld [vmem:[%s1 + $0xa8] sm:$0xf]
  %v90 = vld [vmem:[%s1 + $0xac] sm:$0xf]
  %v91 = vld [vmem:[%s1 + $0xb0] sm:$0xf]
  %v92 = vld [vmem:[%s1 + $0xb4] sm:$0xf]
  %v93 = vld [vmem:[%s1 + $0xb8] sm:$0xf]
  %v94 = vld [vmem:[%s1 + $0xbc] sm:$0xf]
  %v95 = vld [vmem:[%s1 + $0xc0] sm:$0xf]
  %v96 = vld [vmem:[%s1 + $0xc4] sm:$0xf]
  %v97 = vld [vmem:[%s1 + $0xc8] sm:$0xf]
  %v98 = vld [vmem:[%s1 + $0xcc] sm:$0xf]
  %v99 = vld [vmem:[%s1 + $0xd0] sm:$0xf]
  %v100 = vld [vmem:[%s1 + $0xd4] sm:$0xf]
  %v101 = vld [vmem:[%s2] sm:$0x1]
  %v103 = vlaneseq
  %v104 = vshrl.u32 %v103, 7
  %v105 = vsub.s32 0, %v104
  %v106 = vrot.slane %v101, %v105
  %v140 = vunpack.c.l.b16 %v15
  %v141 = vunpack.c.h.b16 %v15
  %v142 = vunpack.c.l.b16 %v16
  %v143 = vunpack.c.h.b16 %v16
  %v144 = vunpack.c.l.b16 %v17
  %v145 = vunpack.c.h.b16 %v17
  %v146 = vunpack.c.l.b16 %v18
  %v147 = vunpack.c.h.b16 %v18
  %v148 = vunpack.c.l.b16 %v19
  %v149 = vunpack.c.h.b16 %v19
  %v150 = vunpack.c.l.b16 %v20
  %v151 = vunpack.c.h.b16 %v20
  %v152 = vunpack.c.l.b16 %v21
  %v153 = vunpack.c.h.b16 %v21
  %v154 = vunpack.c.l.b16 %v22
  %v155 = vunpack.c.h.b16 %v22
  %v156 = vunpack.c.l.b16 %v23
  %v157 = vunpack.c.h.b16 %v23
  %v158 = vunpack.c.l.b16 %v24
  %v159 = vunpack.c.h.b16 %v24
  %v160 = vunpack.c.l.b16 %v25
  %v161 = vunpack.c.h.b16 %v25
  %v162 = vunpack.c.l.b16 %v26
  %v163 = vunpack.c.h.b16 %v26
  %v164 = vunpack.c.l.b16 %v27
  %v165 = vunpack.c.h.b16 %v27
  %v166 = vunpack.c.l.b16 %v28
  %v167 = vunpack.c.h.b16 %v28
  %v168 = vunpack.c.l.b16 %v29
  %v169 = vunpack.c.h.b16 %v29
  %v170 = vunpack.c.l.b16 %v30
  %v171 = vunpack.c.h.b16 %v30
  %v172 = vunpack.c.l.b16 %v31
  %v173 = vunpack.c.h.b16 %v31
  %v174 = vunpack.c.l.b16 %v32
  %v175 = vunpack.c.h.b16 %v32
  %v176 = vunpack.c.l.b16 %v33
  %v177 = vunpack.c.h.b16 %v33
  %v178 = vunpack.c.l.b16 %v34
  %v179 = vunpack.c.h.b16 %v34
  %v180 = vunpack.c.l.b16 %v35
  %v181 = vunpack.c.h.b16 %v35
  %v182 = vunpack.c.l.b16 %v36
  %v183 = vunpack.c.h.b16 %v36
  %v184 = vunpack.c.l.b16 %v37
  %v185 = vunpack.c.h.b16 %v37
  %v186 = vunpack.c.l.b16 %v38
  %v187 = vunpack.c.h.b16 %v38
  %v188 = vunpack.c.l.b16 %v39
  %v189 = vunpack.c.h.b16 %v39
  %v190 = vunpack.c.l.b16 %v40
  %v191 = vunpack.c.h.b16 %v40
  %v192 = vunpack.c.l.b16 %v41
  %v193 = vunpack.c.h.b16 %v41
  %v194 = vunpack.c.l.b16 %v42
  %v195 = vunpack.c.h.b16 %v42
  %v196 = vunpack.c.l.b16 %v43
  %v197 = vunpack.c.h.b16 %v43
  %v198 = vunpack.c.l.b16 %v44
  %v199 = vunpack.c.h.b16 %v44
  %v200 = vunpack.c.l.b16 %v45
  %v201 = vunpack.c.h.b16 %v45
  %v202 = vunpack.c.l.b16 %v46
  %v203 = vunpack.c.h.b16 %v46
  %v204 = vpack.c.b16 %v144, %v140
  %v205 = vpack.c.b16 %v145, %v141
  %v206 = vpack.c.b16 %v146, %v142
  %v207 = vpack.c.b16 %v147, %v143
  %v208 = vpack.c.b16 %v152, %v148
  %v209 = vpack.c.b16 %v153, %v149
  %v210 = vpack.c.b16 %v154, %v150
  %v211 = vpack.c.b16 %v155, %v151
  %v212 = vpack.c.b16 %v160, %v156
  %v213 = vpack.c.b16 %v161, %v157
  %v214 = vpack.c.b16 %v162, %v158
  %v215 = vpack.c.b16 %v163, %v159
  %v216 = vpack.c.b16 %v168, %v164
  %v217 = vpack.c.b16 %v169, %v165
  %v218 = vpack.c.b16 %v170, %v166
  %v219 = vpack.c.b16 %v171, %v167
  %v220 = vpack.c.b16 %v176, %v172
  %v221 = vpack.c.b16 %v177, %v173
  %v222 = vpack.c.b16 %v178, %v174
  %v223 = vpack.c.b16 %v179, %v175
  %v224 = vpack.c.b16 %v184, %v180
  %v225 = vpack.c.b16 %v185, %v181
  %v226 = vpack.c.b16 %v186, %v182
  %v227 = vpack.c.b16 %v187, %v183
  %v228 = vpack.c.b16 %v192, %v188
  %v229 = vpack.c.b16 %v193, %v189
  %v230 = vpack.c.b16 %v194, %v190
  %v231 = vpack.c.b16 %v195, %v191
  %v232 = vpack.c.b16 %v200, %v196
  %v233 = vpack.c.b16 %v201, %v197
  %v234 = vpack.c.b16 %v202, %v198
  %v235 = vpack.c.b16 %v203, %v199
  %v314 = vunpack.c.l.b16 %v47
  %v315 = vunpack.c.l.b16 %v48
  %v316 = vunpack.c.l.b16 %v49
  %v317 = vunpack.c.l.b16 %v50
  %v318 = vunpack.c.l.b16 %v51
  %v319 = vunpack.c.l.b16 %v52
  %v320 = vunpack.c.l.b16 %v53
  %v321 = vunpack.c.l.b16 %v54
  %v322 = vunpack.c.l.b16 %v55
  %v323 = vunpack.c.l.b16 %v56
  %v324 = vunpack.c.l.b16 %v57
  %v325 = vunpack.c.l.b16 %v58
  %v326 = vunpack.c.l.b16 %v59
  %v327 = vunpack.c.l.b16 %v60
  %v328 = vunpack.c.l.b16 %v61
  %v329 = vunpack.c.l.b16 %v62
  %v330 = vunpack.c.l.b16 %v63
  %v331 = vunpack.c.l.b16 %v64
  %v332 = vunpack.c.l.b16 %v65
  %v333 = vunpack.c.l.b16 %v66
  %v334 = vunpack.c.l.b16 %v67
  %v335 = vunpack.c.l.b16 %v68
  %v336 = vunpack.c.l.b16 %v69
  %v337 = vunpack.c.l.b16 %v70
  %v338 = vunpack.c.l.b16 %v71
  %v339 = vunpack.c.l.b16 %v72
  %v340 = vunpack.c.l.b16 %v73
  %v341 = vunpack.c.l.b16 %v74
  %v342 = vunpack.c.l.b16 %v75
  %v343 = vunpack.c.l.b16 %v76
  %v344 = vunpack.c.l.b16 %v77
  %v345 = vunpack.c.l.b16 %v78
  %v346 = vunpack.c.l.b16 %v79
  %v347 = vunpack.c.l.b16 %v80
  %v348 = vunpack.c.l.b16 %v81
  %v349 = vunpack.c.l.b16 %v82
  %v350 = vunpack.c.l.b16 %v83
  %v351 = vunpack.c.l.b16 %v84
  %v352 = vunpack.c.l.b16 %v85
  %v353 = vunpack.c.l.b16 %v86
  %v354 = vunpack.c.l.b16 %v87
  %v355 = vunpack.c.l.b16 %v88
  %v356 = vunpack.c.l.b16 %v89
  %v357 = vunpack.c.l.b16 %v90
  %v358 = vunpack.c.l.b16 %v91
  %v359 = vunpack.c.l.b16 %v92
  %v360 = vunpack.c.l.b16 %v93
  %v361 = vunpack.c.l.b16 %v94
  %v362 = vunpack.c.l.b16 %v95
  %v363 = vunpack.c.l.b16 %v96
  %v364 = vunpack.c.l.b16 %v97
  %v365 = vunpack.c.l.b16 %v98
  %v366 = vunpack.c.l.b16 %v99
  %v367 = vunpack.c.l.b16 %v100
  %v368 = vpack.c.b16 %v315, %v314
  %v369 = vpack.c.b16 %v317, %v316
  %v370 = vpack.c.b16 %v319, %v318
  %v371 = vpack.c.b16 %v321, %v320
  %v372 = vpack.c.b16 %v323, %v322
  %v373 = vpack.c.b16 %v325, %v324
  %v374 = vpack.c.b16 %v327, %v326
  %v375 = vpack.c.b16 %v329, %v328
  %v376 = vpack.c.b16 %v331, %v330
  %v377 = vpack.c.b16 %v333, %v332
  %v378 = vpack.c.b16 %v335, %v334
  %v379 = vpack.c.b16 %v337, %v336
  %v380 = vpack.c.b16 %v339, %v338
  %v381 = vpack.c.b16 %v341, %v340
  %v382 = vpack.c.b16 %v343, %v342
  %v383 = vpack.c.b16 %v345, %v344
  %v384 = vpack.c.b16 %v347, %v346
  %v385 = vpack.c.b16 %v349, %v348
  %v386 = vpack.c.b16 %v351, %v350
  %v387 = vpack.c.b16 %v353, %v352
  %v388 = vpack.c.b16 %v355, %v354
  %v389 = vpack.c.b16 %v357, %v356
  %v390 = vpack.c.b16 %v359, %v358
  %v391 = vpack.c.b16 %v361, %v360
  %v392 = vpack.c.b16 %v363, %v362
  %v393 = vpack.c.b16 %v365, %v364
  %v394 = vpack.c.b16 %v367, %v366
  %vm422 = vcmask 392192
  %v424 = vsel %vm422, %v207, 0
  %v427 = vsel %vm422, %v211, 0
  %v430 = vsel %vm422, %v215, 0
  %v433 = vsel %vm422, %v219, 0
  %v436 = vsel %vm422, %v223, 0
  %v439 = vsel %vm422, %v227, 0
  %v442 = vsel %vm422, %v231, 0
  %v445 = vsel %vm422, %v235, 0
  %447 = vmatprep.subr.bf16.mxu0 0
  %448 = vmatpush1.bf16.msra.mxu0 %v375
  %449 = vmatprep.subr.bf16.mxu0 0
  %450 = vmatpush1.bf16.msra.mxu0 %v374
  %451 = vmatprep.subr.bf16.mxu0 0
  %452 = vmatpush1.bf16.msra.mxu0 %v373
  %453 = vmatprep.subr.bf16.mxu0 0
  %454 = vmatpush1.bf16.msra.mxu0 %v372
  %455 = vmatprep.subr.bf16.mxu0 0
  %456 = vmatpush1.bf16.msra.mxu0 %v371
  %457 = vmatprep.subr.bf16.mxu0 0
  %458 = vmatpush1.bf16.msra.mxu0 %v370
  %459 = vmatprep.subr.bf16.mxu0 0
  %460 = vmatpush1.bf16.msra.mxu0 %v369
  %461 = vmatprep.subr.bf16.mxu0 0
  %462 = vmatpush1.bf16.msra.mxu0 %v368
  %463 = vmatprep.subr.bf16.mxu0 0
  %464 = vmatpush2.bf16.msra.mxu0 %v383
  %465 = vmatprep.subr.bf16.mxu0 0
  %466 = vmatpush2.bf16.msra.mxu0 %v382
  %467 = vmatprep.subr.bf16.mxu0 0
  %468 = vmatpush2.bf16.msra.mxu0 %v381
  %469 = vmatprep.subr.bf16.mxu0 0
  %470 = vmatpush2.bf16.msra.mxu0 %v380
  %471 = vmatprep.subr.bf16.mxu0 0
  %472 = vmatpush2.bf16.msra.mxu0 %v379
  %473 = vmatprep.subr.bf16.mxu0 0
  %474 = vmatpush2.bf16.msra.mxu0 %v378
  %475 = vmatprep.subr.bf16.mxu0 0
  %476 = vmatpush2.bf16.msra.mxu0 %v377
  %477 = vmatprep.subr.bf16.mxu0 0
  %478 = vmatpush2.bf16.msra.mxu0 %v376
  %479 = vmatprep.mubr.bf16.mxu0 %v205
  %480 = vmatmul.mubr.bf16.gmra.mxu0 %v204
  %v481 = vpop.f32.mrf.mxu0
  %v482 = vadd.f32 %v106, %v481
  %v483 = vpop.f32.mrf.mxu0
  %v484 = vpop.f32.mrf.mxu0
  %v485 = vadd.f32 %v106, %v484
  %v486 = vpop.f32.mrf.mxu0
  %487 = vmatprep.mubr.bf16.mxu0 %v209
  %488 = vmatmul.mubr.bf16.gmra.mxu0 %v208
  %v489 = vpop.f32.mrf.mxu0
  %v490 = vadd.f32 %v106, %v489
  %v491 = vpop.f32.mrf.mxu0
  %v492 = vpop.f32.mrf.mxu0
  %v493 = vadd.f32 %v106, %v492
  %v494 = vpop.f32.mrf.mxu0
  %495 = vmatprep.mubr.bf16.mxu0 %v213
  %496 = vmatmul.mubr.bf16.gmra.mxu0 %v212
  %v497 = vpop.f32.mrf.mxu0
  %v498 = vadd.f32 %v106, %v497
  %v499 = vpop.f32.mrf.mxu0
  %v500 = vpop.f32.mrf.mxu0
  %v501 = vadd.f32 %v106, %v500
  %v502 = vpop.f32.mrf.mxu0
  %503 = vmatprep.mubr.bf16.mxu0 %v217
  %504 = vmatmul.mubr.bf16.gmra.mxu0 %v216
  %v505 = vpop.f32.mrf.mxu0
  %v506 = vadd.f32 %v106, %v505
  %v507 = vpop.f32.mrf.mxu0
  %v508 = vpop.f32.mrf.mxu0
  %v509 = vadd.f32 %v106, %v508
  %v510 = vpop.f32.mrf.mxu0
  %511 = vmatprep.mubr.bf16.mxu0 %v221
  %512 = vmatmul.mubr.bf16.gmra.mxu0 %v220
  %v513 = vpop.f32.mrf.mxu0
  %v514 = vadd.f32 %v106, %v513
  %v515 = vpop.f32.mrf.mxu0
  %v516 = vpop.f32.mrf.mxu0
  %v517 = vadd.f32 %v106, %v516
  %v518 = vpop.f32.mrf.mxu0
  %519 = vmatprep.mubr.bf16.mxu0 %v225
  %520 = vmatmul.mubr.bf16.gmra.mxu0 %v224
  %v521 = vpop.f32.mrf.mxu0
  %v522 = vadd.f32 %v106, %v521
  %v523 = vpop.f32.mrf.mxu0
  %v524 = vpop.f32.mrf.mxu0
  %v525 = vadd.f32 %v106, %v524
  %v526 = vpop.f32.mrf.mxu0
  %527 = vmatprep.mubr.bf16.mxu0 %v229
  %528 = vmatmul.mubr.bf16.gmra.mxu0 %v228
  %v529 = vpop.f32.mrf.mxu0
  %v530 = vadd.f32 %v106, %v529
  %v531 = vpop.f32.mrf.mxu0
  %v532 = vpop.f32.mrf.mxu0
  %v533 = vadd.f32 %v106, %v532
  %v534 = vpop.f32.mrf.mxu0
  %535 = vmatprep.mubr.bf16.mxu0 %v233
  %536 = vmatmul.mubr.bf16.gmra.mxu0 %v232
  %v537 = vpop.f32.mrf.mxu0
  %v538 = vadd.f32 %v106, %v537
  %v539 = vpop.f32.mrf.mxu0
  %v540 = vpop.f32.mrf.mxu0
  %v541 = vadd.f32 %v106, %v540
  %v542 = vpop.f32.mrf.mxu0
  %543 = vdwg.mxu0
  %544 = vmatprep.subr.bf16.mxu0 0
  %545 = vmatpush1.bf16.msra.mxu0 %v391
  %546 = vmatprep.subr.bf16.mxu0 0
  %547 = vmatpush1.bf16.msra.mxu0 %v390
  %548 = vmatprep.subr.bf16.mxu0 0
  %549 = vmatpush1.bf16.msra.mxu0 %v389
  %550 = vmatprep.subr.bf16.mxu0 0
  %551 = vmatpush1.bf16.msra.mxu0 %v388
  %552 = vmatprep.subr.bf16.mxu0 0
  %553 = vmatpush1.bf16.msra.mxu0 %v387
  %554 = vmatprep.subr.bf16.mxu0 0
  %555 = vmatpush1.bf16.msra.mxu0 %v386
  %556 = vmatprep.subr.bf16.mxu0 0
  %557 = vmatpush1.bf16.msra.mxu0 %v385
  %558 = vmatprep.subr.bf16.mxu0 0
  %559 = vmatpush1.bf16.msra.mxu0 %v384
  %560 = vmatprep.subr.bf16.mxu0 0
  %561 = vmatpush2.bf16.msra.mxu0 0
  %562 = vmatprep.subr.bf16.mxu0 0
  %563 = vmatpush2.bf16.msra.mxu0 0
  %564 = vmatprep.subr.bf16.mxu0 0
  %565 = vmatpush2.bf16.msra.mxu0 0
  %566 = vmatprep.subr.bf16.mxu0 0
  %567 = vmatpush2.bf16.msra.mxu0 0
  %568 = vmatprep.subr.bf16.mxu0 0
  %569 = vmatpush2.bf16.msra.mxu0 0
  %570 = vmatprep.subr.bf16.mxu0 0
  %571 = vmatpush2.bf16.msra.mxu0 %v394
  %572 = vmatprep.subr.bf16.mxu0 0
  %573 = vmatpush2.bf16.msra.mxu0 %v393
  %574 = vmatprep.subr.bf16.mxu0 0
  %575 = vmatpush2.bf16.msra.mxu0 %v392
  %576 = vmatprep.mubr.bf16.mxu0 %v424
  %577 = vmatmul.mubr.bf16.gmra.mxu0 %v206
  %v578 = vpop.f32.mrf.mxu0
  %v579 = vadd.f32 %v482, %v578
  %v580 = vpop.f32.mrf.mxu0
  %v581 = vpop.f32.mrf.mxu0
  %v582 = vadd.f32 %v485, %v581
  %v583 = vpop.f32.mrf.mxu0
  %584 = vmatprep.mubr.bf16.mxu0 %v427
  %585 = vmatmul.mubr.bf16.gmra.mxu0 %v210
  %v586 = vpop.f32.mrf.mxu0
  %v587 = vadd.f32 %v490, %v586
  %v588 = vpop.f32.mrf.mxu0
  %v589 = vpop.f32.mrf.mxu0
  %v590 = vadd.f32 %v493, %v589
  %v591 = vpop.f32.mrf.mxu0
  %592 = vmatprep.mubr.bf16.mxu0 %v430
  %593 = vmatmul.mubr.bf16.gmra.mxu0 %v214
  %v594 = vpop.f32.mrf.mxu0
  %v595 = vadd.f32 %v498, %v594
  %v596 = vpop.f32.mrf.mxu0
  %v597 = vpop.f32.mrf.mxu0
  %v598 = vadd.f32 %v501, %v597
  %v599 = vpop.f32.mrf.mxu0
  %600 = vmatprep.mubr.bf16.mxu0 %v433
  %601 = vmatmul.mubr.bf16.gmra.mxu0 %v218
  %v602 = vpop.f32.mrf.mxu0
  %v603 = vadd.f32 %v506, %v602
  %v604 = vpop.f32.mrf.mxu0
  %v605 = vpop.f32.mrf.mxu0
  %v606 = vadd.f32 %v509, %v605
  %v607 = vpop.f32.mrf.mxu0
  %608 = vmatprep.mubr.bf16.mxu0 %v436
  %609 = vmatmul.mubr.bf16.gmra.mxu0 %v222
  %v610 = vpop.f32.mrf.mxu0
  %v611 = vadd.f32 %v514, %v610
  %v612 = vpop.f32.mrf.mxu0
  %v613 = vpop.f32.mrf.mxu0
  %v614 = vadd.f32 %v517, %v613
  %v615 = vpop.f32.mrf.mxu0
  %616 = vmatprep.mubr.bf16.mxu0 %v439
  %617 = vmatmul.mubr.bf16.gmra.mxu0 %v226
  %v618 = vpop.f32.mrf.mxu0
  %v619 = vadd.f32 %v522, %v618
  %v620 = vpop.f32.mrf.mxu0
  %v621 = vpop.f32.mrf.mxu0
  %v622 = vadd.f32 %v525, %v621
  %v623 = vpop.f32.mrf.mxu0
  %624 = vmatprep.mubr.bf16.mxu0 %v442
  %625 = vmatmul.mubr.bf16.gmra.mxu0 %v230
  %v626 = vpop.f32.mrf.mxu0
  %v627 = vadd.f32 %v530, %v626
  %v628 = vpop.f32.mrf.mxu0
  %v629 = vpop.f32.mrf.mxu0
  %v630 = vadd.f32 %v533, %v629
  %v631 = vpop.f32.mrf.mxu0
  %632 = vmatprep.mubr.bf16.mxu0 %v445
  %633 = vmatmul.mubr.bf16.gmra.mxu0 %v234
  %v634 = vpop.f32.mrf.mxu0
  %v635 = vadd.f32 %v538, %v634
  %v636 = vpop.f32.mrf.mxu0
  %v637 = vpop.f32.mrf.mxu0
  %v638 = vadd.f32 %v541, %v637
  %v639 = vpop.f32.mrf.mxu0
  %640 = vdwg.mxu0
  %v641 = vmax.f32 %v579, 0.0
  %v642 = vmax.f32 %v582, 0.0
  %v643 = vmax.f32 %v587, 0.0
  %v644 = vmax.f32 %v590, 0.0
  %v645 = vmax.f32 %v595, 0.0
  %v646 = vmax.f32 %v598, 0.0
  %v647 = vmax.f32 %v603, 0.0
  %v648 = vmax.f32 %v606, 0.0
  %v649 = vmax.f32 %v611, 0.0
  %v650 = vmax.f32 %v614, 0.0
  %v651 = vmax.f32 %v619, 0.0
  %v652 = vmax.f32 %v622, 0.0
  %v653 = vmax.f32 %v627, 0.0
  %v654 = vmax.f32 %v630, 0.0
  %v655 = vmax.f32 %v635, 0.0
  %v656 = vmax.f32 %v638, 0.0
  %v657 = vrot.slane %v641, 4
  %v658 = vmax.f32 %v641, %v657
  %v659 = vrot.slane %v658, 2
  %v660 = vmax.f32 %v658, %v659
  %v661 = vrot.slane %v660, 1
  %v662 = vmax.f32 %v660, %v661
  %v663 = vrot.slane %v642, 4
  %v664 = vmax.f32 %v642, %v663
  %v665 = vrot.slane %v664, 2
  %v666 = vmax.f32 %v664, %v665
  %v667 = vrot.slane %v666, 1
  %v668 = vmax.f32 %v666, %v667
  %v669 = vrot.slane %v643, 4
  %v670 = vmax.f32 %v643, %v669
  %v671 = vrot.slane %v670, 2
  %v672 = vmax.f32 %v670, %v671
  %v673 = vrot.slane %v672, 1
  %v674 = vmax.f32 %v672, %v673
  %v675 = vrot.slane %v644, 4
  %v676 = vmax.f32 %v644, %v675
  %v677 = vrot.slane %v676, 2
  %v678 = vmax.f32 %v676, %v677
  %v679 = vrot.slane %v678, 1
  %v680 = vmax.f32 %v678, %v679
  %v681 = vrot.slane %v645, 4
  %v682 = vmax.f32 %v645, %v681
  %v683 = vrot.slane %v682, 2
  %v684 = vmax.f32 %v682, %v683
  %v685 = vrot.slane %v684, 1
  %v686 = vmax.f32 %v684, %v685
  %v687 = vrot.slane %v646, 4
  %v688 = vmax.f32 %v646, %v687
  %v689 = vrot.slane %v688, 2
  %v690 = vmax.f32 %v688, %v689
  %v691 = vrot.slane %v690, 1
  %v692 = vmax.f32 %v690, %v691
  %v693 = vrot.slane %v647, 4
  %v694 = vmax.f32 %v647, %v693
  %v695 = vrot.slane %v694, 2
  %v696 = vmax.f32 %v694, %v695
  %v697 = vrot.slane %v696, 1
  %v698 = vmax.f32 %v696, %v697
  %v699 = vrot.slane %v648, 4
  %v700 = vmax.f32 %v648, %v699
  %v701 = vrot.slane %v700, 2
  %v702 = vmax.f32 %v700, %v701
  %v703 = vrot.slane %v702, 1
  %v704 = vmax.f32 %v702, %v703
  %v705 = vrot.slane %v649, 4
  %v706 = vmax.f32 %v649, %v705
  %v707 = vrot.slane %v706, 2
  %v708 = vmax.f32 %v706, %v707
  %v709 = vrot.slane %v708, 1
  %v710 = vmax.f32 %v708, %v709
  %v711 = vrot.slane %v650, 4
  %v712 = vmax.f32 %v650, %v711
  %v713 = vrot.slane %v712, 2
  %v714 = vmax.f32 %v712, %v713
  %v715 = vrot.slane %v714, 1
  %v716 = vmax.f32 %v714, %v715
  %v717 = vrot.slane %v651, 4
  %v718 = vmax.f32 %v651, %v717
  %v719 = vrot.slane %v718, 2
  %v720 = vmax.f32 %v718, %v719
  %v721 = vrot.slane %v720, 1
  %v722 = vmax.f32 %v720, %v721
  %v723 = vrot.slane %v652, 4
  %v724 = vmax.f32 %v652, %v723
  %v725 = vrot.slane %v724, 2
  %v726 = vmax.f32 %v724, %v725
  %v727 = vrot.slane %v726, 1
  %v728 = vmax.f32 %v726, %v727
  %v729 = vrot.slane %v653, 4
  %v730 = vmax.f32 %v653, %v729
  %v731 = vrot.slane %v730, 2
  %v732 = vmax.f32 %v730, %v731
  %v733 = vrot.slane %v732, 1
  %v734 = vmax.f32 %v732, %v733
  %v735 = vrot.slane %v654, 4
  %v736 = vmax.f32 %v654, %v735
  %v737 = vrot.slane %v736, 2
  %v738 = vmax.f32 %v736, %v737
  %v739 = vrot.slane %v738, 1
  %v740 = vmax.f32 %v738, %v739
  %v741 = vrot.slane %v655, 4
  %v742 = vmax.f32 %v655, %v741
  %v743 = vrot.slane %v742, 2
  %v744 = vmax.f32 %v742, %v743
  %v745 = vrot.slane %v744, 1
  %v746 = vmax.f32 %v744, %v745
  %v747 = vrot.slane %v656, 4
  %v748 = vmax.f32 %v656, %v747
  %v749 = vrot.slane %v748, 2
  %v750 = vmax.f32 %v748, %v749
  %v751 = vrot.slane %v750, 1
  %v752 = vmax.f32 %v750, %v751
  %vm769 = vcmask 1041409
  %v770 = vsel %vm769, %v668, %v662
  %vm771 = vcmask 1042434
  %v772 = vsel %vm771, %v674, %v770
  %vm773 = vcmask 1043459
  %v774 = vsel %vm773, %v680, %v772
  %vm775 = vcmask 1044484
  %v776 = vsel %vm775, %v686, %v774
  %vm777 = vcmask 1045509
  %v778 = vsel %vm777, %v692, %v776
  %vm779 = vcmask 1046534
  %v780 = vsel %vm779, %v698, %v778
  %vm781 = vcmask 1047559
  %v782 = vsel %vm781, %v704, %v780
  %v783 = vsel %vm769, %v716, %v710
  %v784 = vsel %vm771, %v722, %v783
  %v785 = vsel %vm773, %v728, %v784
  %v786 = vsel %vm775, %v734, %v785
  %v787 = vsel %vm777, %v740, %v786
  %v788 = vsel %vm779, %v746, %v787
  %v789 = vsel %vm781, %v752, %v788
  %792 = vst [vmem:[%s3] sm:$0xff] %v782
  %793 = vst [vmem:[%s3 + $0x8] sm:$0xff] %v789
  // Predicated region
  $region14: #{simple_conv3d_net.4} parent=0 // pred_check
    _
  $region15: #{simple_conv3d_net.4} parent=0 // pred_check_branch
    %795 = sbr.rel (0) target = $region17
  $region16: #{simple_conv3d_net.4} parent=0 // pred_region
    _
  $region17: #{simple_conv3d_net.4} parent=0 // pred_fallthru
    _
  // Predicated region
  $region18: #{simple_conv3d_net.4} parent=0 // pred_check
    _
  $region19: #{simple_conv3d_net.4} parent=0 // pred_check_branch
    %797 = sbr.rel (0) target = $region21
  $region20: #{simple_conv3d_net.4} parent=0 // pred_region
    _
  $region21: #{simple_conv3d_net.4} parent=0 // pred_fallthru
    _

// kernel: simple_conv3d_net.5
$region0: #{simple_conv3d_net.5}
  #allocation0 [shape = 'u32[]', space=smem, size = 0x4, offset = 0x4, fixed_abs, tag = 'smem constant byte address 0x4 - core index']
  #allocation1 [shape = 'u32[144,128]{1,0:T(1,128)}', space=vmem, size = 0x12000, scoped, tag = 'internal scratch']
  %s0 = inlined_call_operand.vmem [shape: bf16[16,864], index: 0, kind: input, shape index: {}]
  %s1 = inlined_call_operand.vmem [shape: bf16[864,128], index: 1, kind: input, shape index: {}]
  %s2 = inlined_call_operand.vmem [shape: f32[1,128], index: 2, kind: input, shape index: {}]
  %s3 = inlined_call_operand.vmem [shape: f32[2,128], index: 3, kind: output, shape index: {}]
  %s4 = sld [smem:[#allocation0]]
  $region22: #{simple_conv3d_net.5} parent=0
    _
  %s6 = ssub.s32 1, %s4
  %s7 = scalar_select 0, %s6, %s4
  // Predicated region
  $region2: #{simple_conv3d_net.5} parent=0 // pred_check
    _
  $region3: #{simple_conv3d_net.5} parent=0 // pred_check_branch
    %9 = sbr.rel (0) target = $region5
  $region4: #{simple_conv3d_net.5} parent=0 // pred_region
    _
  $region5: #{simple_conv3d_net.5} parent=0 // pred_fallthru
    _
  // Predicated region
  $region6: #{simple_conv3d_net.5} parent=0 // pred_check
    _
  $region7: #{simple_conv3d_net.5} parent=0 // pred_check_branch
    %11 = sbr.rel (0) target = $region9
  $region8: #{simple_conv3d_net.5} parent=0 // pred_region
    _
  $region9: #{simple_conv3d_net.5} parent=0 // pred_fallthru
    _
  // Predicated region
  $region10: #{simple_conv3d_net.5} parent=0 // pred_check
    _
  $region11: #{simple_conv3d_net.5} parent=0 // pred_check_branch
    %13 = sbr.rel (0) target = $region13
  $region12: #{simple_conv3d_net.5} parent=0 // pred_region
    _
  $region13: #{simple_conv3d_net.5} parent=0 // pred_fallthru
    _
  %v15 = vld [vmem:[%s0] sm:$0xff]
  %v16 = vld [vmem:[%s0 + $0x8] sm:$0xff]
  %v17 = vld [vmem:[%s0 + $0x10] sm:$0xff]
  %v18 = vld [vmem:[%s0 + $0x18] sm:$0xf]
  %v19 = vld [vmem:[%s0 + $0x1c] sm:$0xff]
  %v20 = vld [vmem:[%s0 + $0x24] sm:$0xff]
  %v21 = vld [vmem:[%s0 + $0x2c] sm:$0xff]
  %v22 = vld [vmem:[%s0 + $0x34] sm:$0xf]
  %v23 = vld [vmem:[%s1] sm:$0xf]
  %v24 = vld [vmem:[%s1 + $0x4] sm:$0xf]
  %v25 = vld [vmem:[%s1 + $0x8] sm:$0xf]
  %v26 = vld [vmem:[%s1 + $0xc] sm:$0xf]
  %v27 = vld [vmem:[%s1 + $0x10] sm:$0xf]
  %v28 = vld [vmem:[%s1 + $0x14] sm:$0xf]
  %v29 = vld [vmem:[%s1 + $0x18] sm:$0xf]
  %v30 = vld [vmem:[%s1 + $0x1c] sm:$0xf]
  %v31 = vld [vmem:[%s1 + $0x20] sm:$0xf]
  %v32 = vld [vmem:[%s1 + $0x24] sm:$0xf]
  %v33 = vld [vmem:[%s1 + $0x28] sm:$0xf]
  %v34 = vld [vmem:[%s1 + $0x2c] sm:$0xf]
  %v35 = vld [vmem:[%s1 + $0x30] sm:$0xf]
  %v36 = vld [vmem:[%s1 + $0x34] sm:$0xf]
  %v37 = vld [vmem:[%s1 + $0x38] sm:$0xf]
  %v38 = vld [vmem:[%s1 + $0x3c] sm:$0xf]
  %v39 = vld [vmem:[%s1 + $0x40] sm:$0xf]
  %v40 = vld [vmem:[%s1 + $0x44] sm:$0xf]
  %v41 = vld [vmem:[%s1 + $0x48] sm:$0xf]
  %v42 = vld [vmem:[%s1 + $0x4c] sm:$0xf]
  %v43 = vld [vmem:[%s1 + $0x50] sm:$0xf]
  %v44 = vld [vmem:[%s1 + $0x54] sm:$0xf]
  %v45 = vld [vmem:[%s1 + $0x58] sm:$0xf]
  %v46 = vld [vmem:[%s1 + $0x5c] sm:$0xf]
  %v47 = vld [vmem:[%s1 + $0x60] sm:$0xf]
  %v48 = vld [vmem:[%s1 + $0x64] sm:$0xf]
  %v49 = vld [vmem:[%s1 + $0x68] sm:$0xf]
  %v50 = vld [vmem:[%s1 + $0x6c] sm:$0xf]
  %v51 = vld [vmem:[%s1 + $0x70] sm:$0xf]
  %v52 = vld [vmem:[%s1 + $0x74] sm:$0xf]
  %v53 = vld [vmem:[%s1 + $0x78] sm:$0xf]
  %v54 = vld [vmem:[%s1 + $0x7c] sm:$0xf]
  %v55 = vld [vmem:[%s1 + $0x80] sm:$0xf]
  %v56 = vld [vmem:[%s1 + $0x84] sm:$0xf]
  %v57 = vld [vmem:[%s1 + $0x88] sm:$0xf]
  %v58 = vld [vmem:[%s1 + $0x8c] sm:$0xf]
  %v59 = vld [vmem:[%s1 + $0x90] sm:$0xf]
  %v60 = vld [vmem:[%s1 + $0x94] sm:$0xf]
  %v61 = vld [vmem:[%s1 + $0x98] sm:$0xf]
  %v62 = vld [vmem:[%s1 + $0x9c] sm:$0xf]
  %v63 = vld [vmem:[%s1 + $0xa0] sm:$0xf]
  %v64 = vld [vmem:[%s1 + $0xa4] sm:$0xf]
  %v65 = vld [vmem:[%s1 + $0xa8] sm:$0xf]
  %v66 = vld [vmem:[%s1 + $0xac] sm:$0xf]
  %v67 = vld [vmem:[%s1 + $0xb0] sm:$0xf]
  %v68 = vld [vmem:[%s1 + $0xb4] sm:$0xf]
  %v69 = vld [vmem:[%s1 + $0xb8] sm:$0xf]
  %v70 = vld [vmem:[%s1 + $0xbc] sm:$0xf]
  %v71 = vld [vmem:[%s1 + $0xc0] sm:$0xf]
  %v72 = vld [vmem:[%s1 + $0xc4] sm:$0xf]
  %v73 = vld [vmem:[%s1 + $0xc8] sm:$0xf]
  %v74 = vld [vmem:[%s1 + $0xcc] sm:$0xf]
  %v75 = vld [vmem:[%s1 + $0xd0] sm:$0xf]
  %v76 = vld [vmem:[%s1 + $0xd4] sm:$0xf]
  %v77 = vld [vmem:[%s1 + $0xd8] sm:$0xf]
  %v78 = vld [vmem:[%s1 + $0xdc] sm:$0xf]
  %v79 = vld [vmem:[%s1 + $0xe0] sm:$0xf]
  %v80 = vld [vmem:[%s1 + $0xe4] sm:$0xf]
  %v81 = vld [vmem:[%s1 + $0xe8] sm:$0xf]
  %v82 = vld [vmem:[%s1 + $0xec] sm:$0xf]
  %v83 = vld [vmem:[%s1 + $0xf0] sm:$0xf]
  %v84 = vld [vmem:[%s1 + $0xf4] sm:$0xf]
  %v85 = vld [vmem:[%s1 + $0xf8] sm:$0xf]
  %v86 = vld [vmem:[%s1 + $0xfc] sm:$0xf]
  %v87 = vld [vmem:[%s1 + $0x100] sm:$0xf]
  %v88 = vld [vmem:[%s1 + $0x104] sm:$0xf]
  %v89 = vld [vmem:[%s1 + $0x108] sm:$0xf]
  %v90 = vld [vmem:[%s1 + $0x10c] sm:$0xf]
  %v91 = vld [vmem:[%s1 + $0x110] sm:$0xf]
  %v92 = vld [vmem:[%s1 + $0x114] sm:$0xf]
  %v93 = vld [vmem:[%s1 + $0x118] sm:$0xf]
  %v94 = vld [vmem:[%s1 + $0x11c] sm:$0xf]
  %v95 = vld [vmem:[%s1 + $0x120] sm:$0xf]
  %v96 = vld [vmem:[%s1 + $0x124] sm:$0xf]
  %v97 = vld [vmem:[%s1 + $0x128] sm:$0xf]
  %v98 = vld [vmem:[%s1 + $0x12c] sm:$0xf]
  %v99 = vld [vmem:[%s1 + $0x130] sm:$0xf]
  %v100 = vld [vmem:[%s1 + $0x134] sm:$0xf]
  %v101 = vld [vmem:[%s1 + $0x138] sm:$0xf]
  %v102 = vld [vmem:[%s1 + $0x13c] sm:$0xf]
  %v103 = vld [vmem:[%s1 + $0x140] sm:$0xf]
  %v104 = vld [vmem:[%s1 + $0x144] sm:$0xf]
  %v105 = vld [vmem:[%s1 + $0x148] sm:$0xf]
  %v106 = vld [vmem:[%s1 + $0x14c] sm:$0xf]
  %v107 = vld [vmem:[%s1 + $0x150] sm:$0xf]
  %v108 = vld [vmem:[%s1 + $0x154] sm:$0xf]
  %v109 = vld [vmem:[%s1 + $0x158] sm:$0xf]
  %v110 = vld [vmem:[%s1 + $0x15c] sm:$0xf]
  %v111 = vld [vmem:[%s1 + $0x160] sm:$0xf]
  %v112 = vld [vmem:[%s1 + $0x164] sm:$0xf]
  %v113 = vld [vmem:[%s1 + $0x168] sm:$0xf]
  %v114 = vld [vmem:[%s1 + $0x16c] sm:$0xf]
  %v115 = vld [vmem:[%s1 + $0x170] sm:$0xf]
  %v116 = vld [vmem:[%s1 + $0x174] sm:$0xf]
  %v117 = vld [vmem:[%s1 + $0x178] sm:$0xf]
  %v118 = vld [vmem:[%s1 + $0x17c] sm:$0xf]
  %v119 = vld [vmem:[%s1 + $0x180] sm:$0xf]
  %v120 = vld [vmem:[%s1 + $0x184] sm:$0xf]
  %v121 = vld [vmem:[%s1 + $0x188] sm:$0xf]
  %v122 = vld [vmem:[%s1 + $0x18c] sm:$0xf]
  %v123 = vld [vmem:[%s1 + $0x190] sm:$0xf]
  %v124 = vld [vmem:[%s1 + $0x194] sm:$0xf]
  %v125 = vld [vmem:[%s1 + $0x198] sm:$0xf]
  %v126 = vld [vmem:[%s1 + $0x19c] sm:$0xf]
  %v127 = vld [vmem:[%s1 + $0x1a0] sm:$0xf]
  %v128 = vld [vmem:[%s1 + $0x1a4] sm:$0xf]
  %v129 = vld [vmem:[%s1 + $0x1a8] sm:$0xf]
  %v130 = vld [vmem:[%s1 + $0x1ac] sm:$0xf]
  %v131 = vld [vmem:[%s2] sm:$0x1]
  %v133 = vlaneseq
  %v134 = vshrl.u32 %v133, 7
  %v135 = vsub.s32 0, %v134
  %v136 = vrot.slane %v131, %v135
  %v146 = vunpack.c.l.b16 %v15
  %v147 = vunpack.c.h.b16 %v15
  %v148 = vunpack.c.l.b16 %v16
  %v149 = vunpack.c.h.b16 %v16
  %v150 = vunpack.c.l.b16 %v17
  %v151 = vunpack.c.h.b16 %v17
  %v152 = vunpack.c.l.b16 %v18
  %v153 = vunpack.c.l.b16 %v19
  %v154 = vunpack.c.h.b16 %v19
  %v155 = vunpack.c.l.b16 %v20
  %v156 = vunpack.c.h.b16 %v20
  %v157 = vunpack.c.l.b16 %v21
  %v158 = vunpack.c.h.b16 %v21
  %v159 = vunpack.c.l.b16 %v22
  %v160 = vpack.c.b16 %v153, %v146
  %v161 = vpack.c.b16 %v154, %v147
  %v162 = vpack.c.b16 %v155, %v148
  %v163 = vpack.c.b16 %v156, %v149
  %v164 = vpack.c.b16 %v157, %v150
  %v165 = vpack.c.b16 %v158, %v151
  %v166 = vpack.c.b16 %v159, %v152
  %v281 = vunpack.c.l.b16 %v23
  %v282 = vunpack.c.l.b16 %v24
  %v283 = vunpack.c.l.b16 %v25
  %v284 = vunpack.c.l.b16 %v26
  %v285 = vunpack.c.l.b16 %v27
  %v286 = vunpack.c.l.b16 %v28
  %v287 = vunpack.c.l.b16 %v29
  %v288 = vunpack.c.l.b16 %v30
  %v289 = vunpack.c.l.b16 %v31
  %v290 = vunpack.c.l.b16 %v32
  %v291 = vunpack.c.l.b16 %v33
  %v292 = vunpack.c.l.b16 %v34
  %v293 = vunpack.c.l.b16 %v35
  %v294 = vunpack.c.l.b16 %v36
  %v295 = vunpack.c.l.b16 %v37
  %v296 = vunpack.c.l.b16 %v38
  %v297 = vunpack.c.l.b16 %v39
  %v298 = vunpack.c.l.b16 %v40
  %v299 = vunpack.c.l.b16 %v41
  %v300 = vunpack.c.l.b16 %v42
  %v301 = vunpack.c.l.b16 %v43
  %v302 = vunpack.c.l.b16 %v44
  %v303 = vunpack.c.l.b16 %v45
  %v304 = vunpack.c.l.b16 %v46
  %v305 = vunpack.c.l.b16 %v47
  %v306 = vunpack.c.l.b16 %v48
  %v307 = vunpack.c.l.b16 %v49
  %v308 = vunpack.c.l.b16 %v50
  %v309 = vunpack.c.l.b16 %v51
  %v310 = vunpack.c.l.b16 %v52
  %v311 = vunpack.c.l.b16 %v53
  %v312 = vunpack.c.l.b16 %v54
  %v313 = vunpack.c.l.b16 %v55
  %v314 = vunpack.c.l.b16 %v56
  %v315 = vunpack.c.l.b16 %v57
  %v316 = vunpack.c.l.b16 %v58
  %v317 = vunpack.c.l.b16 %v59
  %v318 = vunpack.c.l.b16 %v60
  %v319 = vunpack.c.l.b16 %v61
  %v320 = vunpack.c.l.b16 %v62
  %v321 = vunpack.c.l.b16 %v63
  %v322 = vunpack.c.l.b16 %v64
  %v323 = vunpack.c.l.b16 %v65
  %v324 = vunpack.c.l.b16 %v66
  %v325 = vunpack.c.l.b16 %v67
  %v326 = vunpack.c.l.b16 %v68
  %v327 = vunpack.c.l.b16 %v69
  %v328 = vunpack.c.l.b16 %v70
  %v329 = vunpack.c.l.b16 %v71
  %v330 = vunpack.c.l.b16 %v72
  %v331 = vunpack.c.l.b16 %v73
  %v332 = vunpack.c.l.b16 %v74
  %v333 = vunpack.c.l.b16 %v75
  %v334 = vunpack.c.l.b16 %v76
  %v335 = vunpack.c.l.b16 %v77
  %v336 = vunpack.c.l.b16 %v78
  %v337 = vunpack.c.l.b16 %v79
  %v338 = vunpack.c.l.b16 %v80
  %v339 = vunpack.c.l.b16 %v81
  %v340 = vunpack.c.l.b16 %v82
  %v341 = vunpack.c.l.b16 %v83
  %v342 = vunpack.c.l.b16 %v84
  %v343 = vunpack.c.l.b16 %v85
  %v344 = vunpack.c.l.b16 %v86
  %v345 = vunpack.c.l.b16 %v87
  %v346 = vunpack.c.l.b16 %v88
  %v347 = vunpack.c.l.b16 %v89
  %v348 = vunpack.c.l.b16 %v90
  %v349 = vunpack.c.l.b16 %v91
  %v350 = vunpack.c.l.b16 %v92
  %v351 = vunpack.c.l.b16 %v93
  %v352 = vunpack.c.l.b16 %v94
  %v353 = vunpack.c.l.b16 %v95
  %v354 = vunpack.c.l.b16 %v96
  %v355 = vunpack.c.l.b16 %v97
  %v356 = vunpack.c.l.b16 %v98
  %v357 = vunpack.c.l.b16 %v99
  %v358 = vunpack.c.l.b16 %v100
  %v359 = vunpack.c.l.b16 %v101
  %v360 = vunpack.c.l.b16 %v102
  %v361 = vunpack.c.l.b16 %v103
  %v362 = vunpack.c.l.b16 %v104
  %v363 = vunpack.c.l.b16 %v105
  %v364 = vunpack.c.l.b16 %v106
  %v365 = vunpack.c.l.b16 %v107
  %v366 = vunpack.c.l.b16 %v108
  %v367 = vunpack.c.l.b16 %v109
  %v368 = vunpack.c.l.b16 %v110
  %v369 = vunpack.c.l.b16 %v111
  %v370 = vunpack.c.l.b16 %v112
  %v371 = vunpack.c.l.b16 %v113
  %v372 = vunpack.c.l.b16 %v114
  %v373 = vunpack.c.l.b16 %v115
  %v374 = vunpack.c.l.b16 %v116
  %v375 = vunpack.c.l.b16 %v117
  %v376 = vunpack.c.l.b16 %v118
  %v377 = vunpack.c.l.b16 %v119
  %v378 = vunpack.c.l.b16 %v120
  %v379 = vunpack.c.l.b16 %v121
  %v380 = vunpack.c.l.b16 %v122
  %v381 = vunpack.c.l.b16 %v123
  %v382 = vunpack.c.l.b16 %v124
  %v383 = vunpack.c.l.b16 %v125
  %v384 = vunpack.c.l.b16 %v126
  %v385 = vunpack.c.l.b16 %v127
  %v386 = vunpack.c.l.b16 %v128
  %v387 = vunpack.c.l.b16 %v129
  %v388 = vunpack.c.l.b16 %v130
  %v389 = vpack.c.b16 %v282, %v281
  %v390 = vpack.c.b16 %v284, %v283
  %v391 = vpack.c.b16 %v286, %v285
  %v392 = vpack.c.b16 %v288, %v287
  %v393 = vpack.c.b16 %v290, %v289
  %v394 = vpack.c.b16 %v292, %v291
  %v395 = vpack.c.b16 %v294, %v293
  %v396 = vpack.c.b16 %v296, %v295
  %v397 = vpack.c.b16 %v298, %v297
  %v398 = vpack.c.b16 %v300, %v299
  %v399 = vpack.c.b16 %v302, %v301
  %v400 = vpack.c.b16 %v304, %v303
  %v401 = vpack.c.b16 %v306, %v305
  %v402 = vpack.c.b16 %v308, %v307
  %v403 = vpack.c.b16 %v310, %v309
  %v404 = vpack.c.b16 %v312, %v311
  %v405 = vpack.c.b16 %v314, %v313
  %v406 = vpack.c.b16 %v316, %v315
  %v407 = vpack.c.b16 %v318, %v317
  %v408 = vpack.c.b16 %v320, %v319
  %v409 = vpack.c.b16 %v322, %v321
  %v410 = vpack.c.b16 %v324, %v323
  %v411 = vpack.c.b16 %v326, %v325
  %v412 = vpack.c.b16 %v328, %v327
  %v413 = vpack.c.b16 %v330, %v329
  %v414 = vpack.c.b16 %v332, %v331
  %v415 = vpack.c.b16 %v334, %v333
  %v416 = vpack.c.b16 %v336, %v335
  %v417 = vpack.c.b16 %v338, %v337
  %v418 = vpack.c.b16 %v340, %v339
  %v419 = vpack.c.b16 %v342, %v341
  %v420 = vpack.c.b16 %v344, %v343
  %v421 = vpack.c.b16 %v346, %v345
  %v422 = vpack.c.b16 %v348, %v347
  %v423 = vpack.c.b16 %v350, %v349
  %v424 = vpack.c.b16 %v352, %v351
  %v425 = vpack.c.b16 %v354, %v353
  %v426 = vpack.c.b16 %v356, %v355
  %v427 = vpack.c.b16 %v358, %v357
  %v428 = vpack.c.b16 %v360, %v359
  %v429 = vpack.c.b16 %v362, %v361
  %v430 = vpack.c.b16 %v364, %v363
  %v431 = vpack.c.b16 %v366, %v365
  %v432 = vpack.c.b16 %v368, %v367
  %v433 = vpack.c.b16 %v370, %v369
  %v434 = vpack.c.b16 %v372, %v371
  %v435 = vpack.c.b16 %v374, %v373
  %v436 = vpack.c.b16 %v376, %v375
  %v437 = vpack.c.b16 %v378, %v377
  %v438 = vpack.c.b16 %v380, %v379
  %v439 = vpack.c.b16 %v382, %v381
  %v440 = vpack.c.b16 %v384, %v383
  %v441 = vpack.c.b16 %v386, %v385
  %v442 = vpack.c.b16 %v388, %v387
  %vm497 = vcmask 785408
  %v499 = vsel %vm497, %v166, 0
  %501 = vmatprep.subr.bf16.mxu0 0
  %502 = vmatpush1.bf16.msra.mxu0 %v396
  %503 = vmatprep.subr.bf16.mxu0 0
  %504 = vmatpush1.bf16.msra.mxu0 %v395
  %505 = vmatprep.subr.bf16.mxu0 0
  %506 = vmatpush1.bf16.msra.mxu0 %v394
  %507 = vmatprep.subr.bf16.mxu0 0
  %508 = vmatpush1.bf16.msra.mxu0 %v393
  %509 = vmatprep.subr.bf16.mxu0 0
  %510 = vmatpush1.bf16.msra.mxu0 %v392
  %511 = vmatprep.subr.bf16.mxu0 0
  %512 = vmatpush1.bf16.msra.mxu0 %v391
  %513 = vmatprep.subr.bf16.mxu0 0
  %514 = vmatpush1.bf16.msra.mxu0 %v390
  %515 = vmatprep.subr.bf16.mxu0 0
  %516 = vmatpush1.bf16.msra.mxu0 %v389
  %517 = vmatprep.subr.bf16.mxu0 0
  %518 = vmatpush2.bf16.msra.mxu0 %v404
  %519 = vmatprep.subr.bf16.mxu0 0
  %520 = vmatpush2.bf16.msra.mxu0 %v403
  %521 = vmatprep.subr.bf16.mxu0 0
  %522 = vmatpush2.bf16.msra.mxu0 %v402
  %523 = vmatprep.subr.bf16.mxu0 0
  %524 = vmatpush2.bf16.msra.mxu0 %v401
  %525 = vmatprep.subr.bf16.mxu0 0
  %526 = vmatpush2.bf16.msra.mxu0 %v400
  %527 = vmatprep.subr.bf16.mxu0 0
  %528 = vmatpush2.bf16.msra.mxu0 %v399
  %529 = vmatprep.subr.bf16.mxu0 0
  %530 = vmatpush2.bf16.msra.mxu0 %v398
  %531 = vmatprep.subr.bf16.mxu0 0
  %532 = vmatpush2.bf16.msra.mxu0 %v397
  %533 = vmatprep.mubr.bf16.mxu0 %v161
  %534 = vmatmul.mubr.bf16.gmra.mxu0 %v160
  %v535 = vpop.f32.mrf.mxu0
  %v536 = vadd.f32 %v136, %v535
  %v537 = vpop.f32.mrf.mxu0
  %v538 = vpop.f32.mrf.mxu0
  %v539 = vadd.f32 %v136, %v538
  %v540 = vpop.f32.mrf.mxu0
  %541 = vdwg.mxu0
  %542 = vmatprep.subr.bf16.mxu0 0
  %543 = vmatpush1.bf16.msra.mxu0 %v412
  %544 = vmatprep.subr.bf16.mxu0 0
  %545 = vmatpush1.bf16.msra.mxu0 %v411
  %546 = vmatprep.subr.bf16.mxu0 0
  %547 = vmatpush1.bf16.msra.mxu0 %v410
  %548 = vmatprep.subr.bf16.mxu0 0
  %549 = vmatpush1.bf16.msra.mxu0 %v409
  %550 = vmatprep.subr.bf16.mxu0 0
  %551 = vmatpush1.bf16.msra.mxu0 %v408
  %552 = vmatprep.subr.bf16.mxu0 0
  %553 = vmatpush1.bf16.msra.mxu0 %v407
  %554 = vmatprep.subr.bf16.mxu0 0
  %555 = vmatpush1.bf16.msra.mxu0 %v406
  %556 = vmatprep.subr.bf16.mxu0 0
  %557 = vmatpush1.bf16.msra.mxu0 %v405
  %558 = vmatprep.subr.bf16.mxu0 0
  %559 = vmatpush2.bf16.msra.mxu0 %v420
  %560 = vmatprep.subr.bf16.mxu0 0
  %561 = vmatpush2.bf16.msra.mxu0 %v419
  %562 = vmatprep.subr.bf16.mxu0 0
  %563 = vmatpush2.bf16.msra.mxu0 %v418
  %564 = vmatprep.subr.bf16.mxu0 0
  %565 = vmatpush2.bf16.msra.mxu0 %v417
  %566 = vmatprep.subr.bf16.mxu0 0
  %567 = vmatpush2.bf16.msra.mxu0 %v416
  %568 = vmatprep.subr.bf16.mxu0 0
  %569 = vmatpush2.bf16.msra.mxu0 %v415
  %570 = vmatprep.subr.bf16.mxu0 0
  %571 = vmatpush2.bf16.msra.mxu0 %v414
  %572 = vmatprep.subr.bf16.mxu0 0
  %573 = vmatpush2.bf16.msra.mxu0 %v413
  %574 = vmatprep.mubr.bf16.mxu0 %v163
  %575 = vmatmul.mubr.bf16.gmra.mxu0 %v162
  %v576 = vpop.f32.mrf.mxu0
  %v577 = vadd.f32 %v536, %v576
  %v578 = vpop.f32.mrf.mxu0
  %v579 = vpop.f32.mrf.mxu0
  %v580 = vadd.f32 %v539, %v579
  %v581 = vpop.f32.mrf.mxu0
  %582 = vdwg.mxu0
  %583 = vmatprep.subr.bf16.mxu0 0
  %584 = vmatpush1.bf16.msra.mxu0 %v428
  %585 = vmatprep.subr.bf16.mxu0 0
  %586 = vmatpush1.bf16.msra.mxu0 %v427
  %587 = vmatprep.subr.bf16.mxu0 0
  %588 = vmatpush1.bf16.msra.mxu0 %v426
  %589 = vmatprep.subr.bf16.mxu0 0
  %590 = vmatpush1.bf16.msra.mxu0 %v425
  %591 = vmatprep.subr.bf16.mxu0 0
  %592 = vmatpush1.bf16.msra.mxu0 %v424
  %593 = vmatprep.subr.bf16.mxu0 0
  %594 = vmatpush1.bf16.msra.mxu0 %v423
  %595 = vmatprep.subr.bf16.mxu0 0
  %596 = vmatpush1.bf16.msra.mxu0 %v422
  %597 = vmatprep.subr.bf16.mxu0 0
  %598 = vmatpush1.bf16.msra.mxu0 %v421
  %599 = vmatprep.subr.bf16.mxu0 0
  %600 = vmatpush2.bf16.msra.mxu0 %v436
  %601 = vmatprep.subr.bf16.mxu0 0
  %602 = vmatpush2.bf16.msra.mxu0 %v435
  %603 = vmatprep.subr.bf16.mxu0 0
  %604 = vmatpush2.bf16.msra.mxu0 %v434
  %605 = vmatprep.subr.bf16.mxu0 0
  %606 = vmatpush2.bf16.msra.mxu0 %v433
  %607 = vmatprep.subr.bf16.mxu0 0
  %608 = vmatpush2.bf16.msra.mxu0 %v432
  %609 = vmatprep.subr.bf16.mxu0 0
  %610 = vmatpush2.bf16.msra.mxu0 %v431
  %611 = vmatprep.subr.bf16.mxu0 0
  %612 = vmatpush2.bf16.msra.mxu0 %v430
  %613 = vmatprep.subr.bf16.mxu0 0
  %614 = vmatpush2.bf16.msra.mxu0 %v429
  %615 = vmatprep.mubr.bf16.mxu0 %v165
  %616 = vmatmul.mubr.bf16.gmra.mxu0 %v164
  %v617 = vpop.f32.mrf.mxu0
  %v618 = vadd.f32 %v577, %v617
  %v619 = vpop.f32.mrf.mxu0
  %v620 = vpop.f32.mrf.mxu0
  %v621 = vadd.f32 %v580, %v620
  %v622 = vpop.f32.mrf.mxu0
  %623 = vdwg.mxu0
  %624 = vmatprep.subr.bf16.mxu0 0
  %625 = vmatpush1.bf16.msra.mxu0 0
  %626 = vmatprep.subr.bf16.mxu0 0
  %627 = vmatpush1.bf16.msra.mxu0 0
  %628 = vmatprep.subr.bf16.mxu0 0
  %629 = vmatpush1.bf16.msra.mxu0 %v442
  %630 = vmatprep.subr.bf16.mxu0 0
  %631 = vmatpush1.bf16.msra.mxu0 %v441
  %632 = vmatprep.subr.bf16.mxu0 0
  %633 = vmatpush1.bf16.msra.mxu0 %v440
  %634 = vmatprep.subr.bf16.mxu0 0
  %635 = vmatpush1.bf16.msra.mxu0 %v439
  %636 = vmatprep.subr.bf16.mxu0 0
  %637 = vmatpush1.bf16.msra.mxu0 %v438
  %638 = vmatprep.subr.bf16.mxu0 0
  %639 = vmatpush1.bf16.msra.mxu0 %v437
  %640 = vmatprep.subr.bf16.mxu0 0
  %641 = vmatpush2.bf16.msra.mxu0 0
  %642 = vmatprep.subr.bf16.mxu0 0
  %643 = vmatpush2.bf16.msra.mxu0 0
  %644 = vmatprep.subr.bf16.mxu0 0
  %645 = vmatpush2.bf16.msra.mxu0 0
  %646 = vmatprep.subr.bf16.mxu0 0
  %647 = vmatpush2.bf16.msra.mxu0 0
  %648 = vmatprep.subr.bf16.mxu0 0
  %649 = vmatpush2.bf16.msra.mxu0 0
  %650 = vmatprep.subr.bf16.mxu0 0
  %651 = vmatpush2.bf16.msra.mxu0 0
  %652 = vmatprep.subr.bf16.mxu0 0
  %653 = vmatpush2.bf16.msra.mxu0 0
  %654 = vmatprep.subr.bf16.mxu0 0
  %655 = vmatpush2.bf16.msra.mxu0 0
  %656 = vmatprep.mubr.bf16.mxu0 0
  %657 = vmatmul.mubr.bf16.gmra.mxu0 %v499
  %v658 = vpop.f32.mrf.mxu0
  %v659 = vadd.f32 %v618, %v658
  %v660 = vpop.f32.mrf.mxu0
  %v661 = vpop.f32.mrf.mxu0
  %v662 = vadd.f32 %v621, %v661
  %v663 = vpop.f32.mrf.mxu0
  %664 = vdwg.mxu0
  %v665 = vmax.f32 %v659, 0.0
  %v666 = vmax.f32 %v662, 0.0
  %v667 = vrot.slane %v665, 4
  %v668 = vadd.f32 %v665, %v667
  %v669 = vrot.slane %v668, 2
  %v670 = vadd.f32 %v668, %v669
  %v671 = vrot.slane %v670, 1
  %v672 = vadd.f32 %v670, %v671
  %v673 = vrot.slane %v666, 4
  %v674 = vadd.f32 %v666, %v673
  %v675 = vrot.slane %v674, 2
  %v676 = vadd.f32 %v674, %v675
  %v677 = vrot.slane %v676, 1
  %v678 = vadd.f32 %v676, %v677
  %v679 = vrcp.pop 8.0
  %v680 = vmul.f32 %v672, %v679
  %v681 = vmul.f32 %v678, %v679
  %vm684 = vcmask 1041409
  %v685 = vsel %vm684, %v681, %v680
  %687 = vst [vmem:[%s3] sm:$0x3] %v685
  // Predicated region
  $region14: #{simple_conv3d_net.5} parent=0 // pred_check
    _
  $region15: #{simple_conv3d_net.5} parent=0 // pred_check_branch
    %689 = sbr.rel (0) target = $region17
  $region16: #{simple_conv3d_net.5} parent=0 // pred_region
    _
  $region17: #{simple_conv3d_net.5} parent=0 // pred_fallthru
    _
  // Predicated region
  $region18: #{simple_conv3d_net.5} parent=0 // pred_check
    _
  $region19: #{simple_conv3d_net.5} parent=0 // pred_check_branch
    %691 = sbr.rel (0) target = $region21
  $region20: #{simple_conv3d_net.5} parent=0 // pred_region
    _
  $region21: #{simple_conv3d_net.5} parent=0 // pred_fallthru
    _

</llo_original>
